<compile_context>
chip_gen: v5e
topology: v5e:2x2
jax: 0.10.0
libtpu: 0.0.40
codegen_flags: <defaults>
</compile_context>

<pallas_src>
import functools

import jax
import jax.numpy as jnp
from jax.experimental import pallas as pl
from jax.experimental.pallas import tpu as pltpu

EPS = 1e-5                 # torch.nn.LayerNorm default
NEG_INF = -1e30            # finite mask value (robust vs. exp(-inf - -inf))


def _detect_vmem_limit():
    """Per-generation VMEM budget with ~25% headroom (v5e/v6e: 128 MiB phys,
    v7x: 64 MiB phys). Falls back to a v7x-safe 48 MiB if the query fails."""
    try:
        cap = int(pltpu.get_tpu_info().vmem_capacity_bytes)
    except Exception:
        cap = 64 * 1024 * 1024
    return max(32 * 1024 * 1024, min(cap * 3 // 4, 100 * 1024 * 1024))


VMEM_LIMIT = _detect_vmem_limit()


def _pick_tile(dim, candidates):
    """Largest candidate that evenly divides `dim`, else the full dim.
    TODO(synk): pad/mask non-divisible dims instead of falling back to full."""
    for c in candidates:
        if c <= dim and dim % c == 0:
            return c
    return dim


# ---------------------------------------------------------------------------
# Standalone LayerNorm (only used for the final layer norm)
# ---------------------------------------------------------------------------
def _layernorm_kernel(x_ref, g_ref, b_ref, o_ref):
    x = x_ref[...].astype(jnp.float32)
    mean = jnp.mean(x, axis=-1, keepdims=True)
    var = jnp.mean(jnp.square(x - mean), axis=-1, keepdims=True)
    y = (x - mean) * jax.lax.rsqrt(var + EPS)
    o_ref[...] = (y * g_ref[...] + b_ref[...]).astype(o_ref.dtype)


def layernorm(x, gamma, beta, out_dtype):
    T, D = x.shape
    bt = _pick_tile(T, (512, 256, 128, 64, 32, 16, 8))
    return pl.pallas_call(
        _layernorm_kernel,
        out_shape=jax.ShapeDtypeStruct((T, D), out_dtype),
        grid=(T // bt,),
        in_specs=[pl.BlockSpec((bt, D), lambda i: (i, 0)),
                  pl.BlockSpec((1, D), lambda i: (0, 0)),
                  pl.BlockSpec((1, D), lambda i: (0, 0))],
        out_specs=pl.BlockSpec((bt, D), lambda i: (i, 0)),
        compiler_params=pltpu.CompilerParams(
            dimension_semantics=("parallel",),
            vmem_limit_bytes=VMEM_LIMIT),
    )(x, gamma, beta)


# ---------------------------------------------------------------------------
# Plain tiled matmul: out = [residual +] act(x @ W + b)
#   grid = (M/tm, N/tn, K/tk), reduction axis last, f32 VMEM accumulator.
# ---------------------------------------------------------------------------
def _matmul_kernel(x_ref, w_ref, b_ref, *refs, activation, with_residual):
    if with_residual:
        res_ref, o_ref, acc_ref = refs
    else:
        res_ref = None
        o_ref, acc_ref = refs

    k = pl.program_id(2)

    @pl.when(k == 0)
    def _():
        acc_ref[...] = jnp.zeros_like(acc_ref)

    acc_ref[...] += jnp.dot(x_ref[...], w_ref[...],
                            preferred_element_type=jnp.float32)

    @pl.when(k == pl.num_programs(2) - 1)
    def _():
        out = acc_ref[...] + b_ref[...].astype(jnp.float32)
        if activation == "relu":
            out = jnp.maximum(out, 0.0)
        if with_residual:
            out = out + res_ref[...].astype(jnp.float32)
        o_ref[...] = out.astype(o_ref.dtype)


def linear(x, w, b, *, residual=None, activation=None, out_dtype=jnp.bfloat16):
    M, K = x.shape
    K2, N = w.shape
    assert K == K2
    # Big tiles: amortize per-step overhead, cut re-fetch traffic. On v7x keep
    # an eye on >=2 blocks along a "parallel" axis so both cores get work.
    tm = _pick_tile(M, (512, 256, 128, 64, 32, 16, 8))
    tn = _pick_tile(N, (512, 256, 128))
    tk = _pick_tile(K, (1024, 512, 256, 128))

    kernel = functools.partial(_matmul_kernel, activation=activation,
                               with_residual=residual is not None)

    in_specs = [
        pl.BlockSpec((tm, tk), lambda i, j, k: (i, k)),
        pl.BlockSpec((tk, tn), lambda i, j, k: (k, j)),
        pl.BlockSpec((1, tn), lambda i, j, k: (0, j)),
    ]
    args = [x, w, b]
    if residual is not None:
        in_specs.append(pl.BlockSpec((tm, tn), lambda i, j, k: (i, j)))
        args.append(residual)

    return pl.pallas_call(
        kernel,
        out_shape=jax.ShapeDtypeStruct((M, N), out_dtype),
        grid=(M // tm, N // tn, K // tk),
        in_specs=in_specs,
        out_specs=pl.BlockSpec((tm, tn), lambda i, j, k: (i, j)),
        scratch_shapes=[pltpu.VMEM((tm, tn), jnp.float32)],
        compiler_params=pltpu.CompilerParams(
            dimension_semantics=("parallel", "parallel", "arbitrary"),
            vmem_limit_bytes=VMEM_LIMIT),
    )(*args)


# ---------------------------------------------------------------------------
# LayerNorm fused into the consumer matmul: out = act(LN(x) @ W + b)
#   x row block (tm, K) stays resident across j/k; LN'd once into a bf16
#   scratch at k == 0 and sliced with pl.ds per reduction step.
# ---------------------------------------------------------------------------
def _ln_matmul_kernel(x_ref, g_ref, bln_ref, w_ref, b_ref, o_ref,
                      acc_ref, xln_ref, *, activation, tk):
    k = pl.program_id(2)

    @pl.when(k == 0)
    def _():
        acc_ref[...] = jnp.zeros_like(acc_ref)
        x = x_ref[...].astype(jnp.float32)
        mean = jnp.mean(x, axis=-1, keepdims=True)
        var = jnp.mean(jnp.square(x - mean), axis=-1, keepdims=True)
        y = (x - mean) * jax.lax.rsqrt(var + EPS)
        xln_ref[...] = (y * g_ref[...] + bln_ref[...]).astype(xln_ref.dtype)

    start = pl.multiple_of(k * tk, tk)
    acc_ref[...] += jnp.dot(xln_ref[:, pl.ds(start, tk)], w_ref[...],
                            preferred_element_type=jnp.float32)

    @pl.when(k == pl.num_programs(2) - 1)
    def _():
        out = acc_ref[...] + b_ref[...].astype(jnp.float32)
        if activation == "relu":
            out = jnp.maximum(out, 0.0)
        o_ref[...] = out.astype(o_ref.dtype)


def ln_linear(x, gamma, beta, w, b, *, activation=None,
              out_dtype=jnp.bfloat16):
    M, K = x.shape
    K2, N = w.shape
    assert K == K2
    # Bound tm so the resident (tm, K) f32 block + bf16 LN scratch fit VMEM
    # comfortably even with double-buffering.
    tm_cands = tuple(c for c in (256, 128, 64, 32, 16, 8)
                     if c * K * 12 <= VMEM_LIMIT) or (8,)
    tm = _pick_tile(M, tm_cands)
    tn = _pick_tile(N, (512, 256, 128))
    tk = _pick_tile(K, (1024, 512, 256, 128))

    kernel = functools.partial(_ln_matmul_kernel, activation=activation, tk=tk)

    return pl.pallas_call(
        kernel,
        out_shape=jax.ShapeDtypeStruct((M, N), out_dtype),
        grid=(M // tm, N // tn, K // tk),
        in_specs=[
            pl.BlockSpec((tm, K), lambda i, j, k: (i, 0)),   # raw residual rows
            pl.BlockSpec((1, K), lambda i, j, k: (0, 0)),    # LN gamma
            pl.BlockSpec((1, K), lambda i, j, k: (0, 0)),    # LN beta
            pl.BlockSpec((tk, tn), lambda i, j, k: (k, j)),  # weight tile
            pl.BlockSpec((1, tn), lambda i, j, k: (0, j)),   # bias tile
        ],
        out_specs=pl.BlockSpec((tm, tn), lambda i, j, k: (i, j)),
        scratch_shapes=[pltpu.VMEM((tm, tn), jnp.float32),
                        pltpu.VMEM((tm, K), jnp.bfloat16)],
        compiler_params=pltpu.CompilerParams(
            dimension_semantics=("parallel", "parallel", "arbitrary"),
            vmem_limit_bytes=VMEM_LIMIT),
    )(x, gamma, beta, w, b)


# ---------------------------------------------------------------------------
# Flash-style causal attention reading straight from the [T, 3D] QKV slab and
# writing a [T, D] slab. `hpb` heads are batched per grid step so the q/k/v/o
# tiles are 128-lane dense (hpb = 2 for head_dim = 64). K/V index_maps are
# clamped to the causal diagonal so fully-masked tiles are never DMA'd.
# ---------------------------------------------------------------------------
def _flash_attn_kernel(q_ref, k_ref, v_ref, o_ref, m_sc, l_sc, acc_sc,
                       *, scale, bq, bk, hpb, head_dim):
    qi = pl.program_id(1)
    ki = pl.program_id(2)

    @pl.when(ki == 0)
    def _():
        m_sc[...] = jnp.full_like(m_sc, NEG_INF)
        l_sc[...] = jnp.zeros_like(l_sc)
        acc_sc[...] = jnp.zeros_like(acc_sc)

    q_start = qi * bq
    k_start = ki * bk

    # Skip KV tiles that lie entirely above the causal diagonal.
    @pl.when(k_start <= q_start + bq - 1)
    def _():
        row = q_start + jax.lax.broadcasted_iota(jnp.int32, (bq, bk), 0)
        col = k_start + jax.lax.broadcasted_iota(jnp.int32, (bq, bk), 1)
        causal = row >= col
        # Softmax scale folded into q once per step (stays bf16; 2^-k exact).
        q_all = q_ref[...] * scale                         # [bq, hpb*d]
        for j in range(hpb):
            lo, hi = j * head_dim, (j + 1) * head_dim
            q = q_all[:, lo:hi]                            # [bq, d]
            k = k_ref[:, lo:hi]                            # [bk, d]
            v = v_ref[:, lo:hi]                            # [bk, d]
            s = jax.lax.dot_general(q, k, (((1,), (1,)), ((), ())),
                                    preferred_element_type=jnp.float32)
            s = jnp.where(causal, s, NEG_INF)
            m_prev = m_sc[j]
            m_new = jnp.maximum(m_prev, jnp.max(s, axis=-1, keepdims=True))
            alpha = jnp.exp(m_prev - m_new)
            p = jnp.exp(s - m_new)
            l_sc[j] = alpha * l_sc[j] + jnp.sum(p, axis=-1, keepdims=True)
            acc_sc[j] = alpha * acc_sc[j] + jnp.dot(
                p.astype(v.dtype), v, preferred_element_type=jnp.float32)
            m_sc[j] = m_new

    # NOTE: finalize runs at ki == last even if that kv tile's compute was
    # causally skipped; this is correct because the output block index is
    # independent of ki and the scratch already holds the final accumulators.
    @pl.when(ki == pl.num_programs(2) - 1)
    def _():
        for j in range(hpb):
            inv = pl.reciprocal(l_sc[j], approx=True)      # EUP slot, ~free
            o_ref[:, j * head_dim:(j + 1) * head_dim] = (
                acc_sc[j] * inv).astype(o_ref.dtype)


def flash_attention_qkv(qkv, *, num_heads, head_dim, scale):
    T, threeD = qkv.shape
    D = num_heads * head_dim
    assert threeD == 3 * D

    hpb = max(1, 128 // head_dim) if head_dim <= 128 else 1
    if num_heads % hpb != 0:
        hpb = 1
    G = num_heads // hpb                                  # head groups
    bw = hpb * head_dim                                   # lane-dense width

    bq = _pick_tile(T, (256, 128, 64, 32, 16, 8))
    bk = _pick_tile(T, (1024, 512, 256, 128, 64, 32, 16, 8))

    def q_map(g, qi, ki):
        return (qi, g)

    def kv_clamp(qi, ki):
        # largest kv tile index that still intersects the causal region
        return jnp.minimum(ki, (qi * bq + bq - 1) // bk)

    def k_map(g, qi, ki):
        return (kv_clamp(qi, ki), G + g)

    def v_map(g, qi, ki):
        return (kv_clamp(qi, ki), 2 * G + g)

    kernel = functools.partial(_flash_attn_kernel, scale=scale, bq=bq, bk=bk,
                               hpb=hpb, head_dim=head_dim)
    return pl.pallas_call(
        kernel,
        out_shape=jax.ShapeDtypeStruct((T, D), qkv.dtype),
        grid=(G, T // bq, T // bk),
        in_specs=[pl.BlockSpec((bq, bw), q_map),
                  pl.BlockSpec((bk, bw), k_map),
                  pl.BlockSpec((bk, bw), v_map)],
        out_specs=pl.BlockSpec((bq, bw), q_map),
        scratch_shapes=[pltpu.VMEM((hpb, bq, 1), jnp.float32),
                        pltpu.VMEM((hpb, bq, 1), jnp.float32),
                        pltpu.VMEM((hpb, bq, head_dim), jnp.float32)],
        compiler_params=pltpu.CompilerParams(
            dimension_semantics=("parallel", "parallel", "arbitrary"),
            vmem_limit_bytes=VMEM_LIMIT),
    )(qkv, qkv, qkv)


# ---------------------------------------------------------------------------
# OPT decoder layer / model forward
# ---------------------------------------------------------------------------
def opt_decoder_layer(h, p, *, num_heads, head_dim):
    # ---- self-attention block (do_layer_norm_before=True) ----
    qkv = ln_linear(h, p["ln1_g"], p["ln1_b"], p["wqkv"], p["bqkv"],
                    out_dtype=jnp.bfloat16)                      # [T, 3D]
    attn = flash_attention_qkv(qkv, num_heads=num_heads, head_dim=head_dim,
                               scale=head_dim ** -0.5)           # [T, D]
    h = linear(attn, p["wo"], p["bo"], residual=h, out_dtype=jnp.float32)

    # ---- MLP block ----
    f = ln_linear(h, p["ln2_g"], p["ln2_b"], p["w1"], p["b1"],
                  activation="relu", out_dtype=jnp.bfloat16)     # [T, FFN]
    h = linear(f, p["w2"], p["b2"], residual=h, out_dtype=jnp.float32)
    return h


def opt_model_forward(params, input_ids, positions, kv_caches,
                      *, num_heads, head_dim):
    # Embedding gathers are glue in plain JAX (word_embed_proj_dim == hidden,
    # so project_in / project_out are None).
    tok = params["embed_tokens"][input_ids]
    pos = params["embed_positions"][positions + 2]   # learned pos, offset = 2
    h = (tok + pos).astype(jnp.float32)

    for i, lp in enumerate(params["layers"]):
        # TODO(synk): kv_caches[i] writeback not modelled (prefill only).
        h = opt_decoder_layer(h, lp, num_heads=num_heads, head_dim=head_dim)

    # do_layer_norm_before and not _remove_final_layer_norm => final LN
    h = layernorm(h, params["final_ln_g"], params["final_ln_b"], jnp.float32)
    return h


# ---------------------------------------------------------------------------
# Parameter construction (deterministic, synthetic). Linear weights stored
# bf16 and pre-transposed to [in, out]; biases / LN params f32.
# ---------------------------------------------------------------------------
def init_opt_params(key, *, vocab_size, max_pos, hidden, ffn, num_layers):
    def nrm(k, shape, dtype=jnp.float32):
        return (0.02 * jax.random.normal(k, shape, dtype=jnp.float32)).astype(dtype)

    keys = jax.random.split(key, 2 + 4 * num_layers)
    params = {
        "embed_tokens": nrm(keys[0], (vocab_size, hidden)),
        "embed_positions": nrm(keys[1], (max_pos + 2, hidden)),
        "final_ln_g": jnp.ones((1, hidden), jnp.float32),
        "final_ln_b": jnp.zeros((1, hidden), jnp.float32),
        "layers": [],
    }
    kidx = 2
    for _ in range(num_layers):
        layer = {
            "ln1_g": jnp.ones((1, hidden), jnp.float32),
            "ln1_b": jnp.zeros((1, hidden), jnp.float32),
            "wqkv": nrm(keys[kidx + 0], (hidden, 3 * hidden), jnp.bfloat16),
            "bqkv": jnp.zeros((1, 3 * hidden), jnp.float32),
            "wo": nrm(keys[kidx + 1], (hidden, hidden), jnp.bfloat16),
            "bo": jnp.zeros((1, hidden), jnp.float32),
            "ln2_g": jnp.ones((1, hidden), jnp.float32),
            "ln2_b": jnp.zeros((1, hidden), jnp.float32),
            "w1": nrm(keys[kidx + 2], (hidden, ffn), jnp.bfloat16),
            "b1": jnp.zeros((1, ffn), jnp.float32),
            "w2": nrm(keys[kidx + 3], (ffn, hidden), jnp.bfloat16),
            "b2": jnp.zeros((1, hidden), jnp.float32),
        }
        kidx += 4
        params["layers"].append(layer)
    return params


# ---------------------------------------------------------------------------
# Pure-JAX reference (f32) for a loose correctness check
# ---------------------------------------------------------------------------
def _reference_forward(params, input_ids, positions, *, num_heads, head_dim):
    tok = params["embed_tokens"][input_ids]
    pos = params["embed_positions"][positions + 2]
    h = (tok + pos).astype(jnp.float32)
    T, D = h.shape

    def ln(x, g, b):
        m = jnp.mean(x, axis=-1, keepdims=True)
        v = jnp.mean((x - m) ** 2, axis=-1, keepdims=True)
        return (x - m) * jax.lax.rsqrt(v + EPS) * g + b

    mask = jnp.tril(jnp.ones((T, T), bool))
    for p in params["layers"]:
        x = ln(h, p["ln1_g"], p["ln1_b"])
        qkv = x @ p["wqkv"].astype(jnp.float32) + p["bqkv"]
        q, k, v = jnp.split(qkv, 3, axis=-1)
        q = q.reshape(T, num_heads, head_dim).transpose(1, 0, 2)
        k = k.reshape(T, num_heads, head_dim).transpose(1, 0, 2)
        v = v.reshape(T, num_heads, head_dim).transpose(1, 0, 2)
        s = jnp.einsum("htd,hsd->hts", q, k) * head_dim ** -0.5
        s = jnp.where(mask[None], s, NEG_INF)
        a = jnp.einsum("hts,hsd->htd", jax.nn.softmax(s, axis=-1), v)
        a = a.transpose(1, 0, 2).reshape(T, D)
        h = h + a @ p["wo"].astype(jnp.float32) + p["bo"]
        x = ln(h, p["ln2_g"], p["ln2_b"])
        f = jnp.maximum(x @ p["w1"].astype(jnp.float32) + p["b1"], 0.0)
        h = h + f @ p["w2"].astype(jnp.float32) + p["b2"]
    return ln(h, params["final_ln_g"], params["final_ln_b"])


# ---------------------------------------------------------------------------
# Demo
# ---------------------------------------------------------------------------
if __name__ == "__main__":
    # small OPT-like config with (8,128)-friendly dims
    VOCAB = 512
    MAX_POS = 256
    HIDDEN = 256
    NUM_HEADS = 4
    HEAD_DIM = HIDDEN // NUM_HEADS
    FFN = 1024
    NUM_LAYERS = 2
    SEQ = 128

    key = jax.random.PRNGKey(0)
    pkey, ikey = jax.random.split(key)
    params = init_opt_params(pkey, vocab_size=VOCAB, max_pos=MAX_POS,
                             hidden=HIDDEN, ffn=FFN, num_layers=NUM_LAYERS)

    input_ids = jax.random.randint(ikey, (SEQ,), 0, VOCAB, dtype=jnp.int32)
    positions = jnp.arange(SEQ, dtype=jnp.int32)

    # dummy (unused) KV caches, one per layer
    kv_caches = [(jnp.zeros((SEQ, NUM_HEADS, HEAD_DIM), jnp.float32),
                  jnp.zeros((SEQ, NUM_HEADS, HEAD_DIM), jnp.float32))
                 for _ in range(NUM_LAYERS)]

    out = opt_model_forward(params, input_ids, positions, kv_caches,
                            num_heads=NUM_HEADS, head_dim=HEAD_DIM)
    out = jax.block_until_ready(out)

    assert out.shape == (SEQ, HIDDEN)
    assert jnp.isfinite(out).all()

    ref = _reference_forward(params, input_ids, positions,
                             num_heads=NUM_HEADS, head_dim=HEAD_DIM)
    max_err = float(jnp.max(jnp.abs(out - ref)))
    assert max_err < 5e-2, f"max abs error vs reference: {max_err}"

    print("KERNEL_OK")
</pallas_src>

<mosaic_0001>
module attributes {stable_mosaic.version = 11 : i64} {
  func.func @_ln_matmul_kernel(%arg0: i32, %arg1: i32, %arg2: i32, %arg3: memref<128x256xf32, #tpu.memory_space<vmem>>, %arg4: memref<1x256xf32, #tpu.memory_space<vmem>>, %arg5: memref<1x256xf32, #tpu.memory_space<vmem>>, %arg6: memref<256x256xbf16, #tpu.memory_space<vmem>>, %arg7: memref<1x256xf32, #tpu.memory_space<vmem>>, %arg8: memref<128x256xbf16, #tpu.memory_space<vmem>>, %arg9: memref<128x256xf32, #tpu.memory_space<vmem>>, %arg10: memref<128x256xbf16, #tpu.memory_space<vmem>>) attributes {dimension_semantics = [#tpu.dimension_semantics<parallel>, #tpu.dimension_semantics<parallel>, #tpu.dimension_semantics<arbitrary>], iteration_bounds = array<i64: 1, 3, 1>, scalar_prefetch = 0 : i64, scratch_operands = 2 : i64, tpu.core_type = #tpu.core_type<tc>, window_params = [{transform_indices = @transform_0, window_bounds = array<i64: 128, 256>}, {pipeline_mode = #tpu.pipeline_mode<synchronous>, transform_indices = @transform_1, window_bounds = array<i64: 1, 256>}, {pipeline_mode = #tpu.pipeline_mode<synchronous>, transform_indices = @transform_2, window_bounds = array<i64: 1, 256>}, {transform_indices = @transform_3, window_bounds = array<i64: 256, 256>}, {transform_indices = @transform_4, window_bounds = array<i64: 1, 256>}, {transform_indices = @transform_5, window_bounds = array<i64: 128, 256>}]} {
    %c0_i32 = arith.constant 0 : i32
    %0 = arith.cmpi eq, %arg2, %c0_i32 : i32
    %1 = arith.extui %0 : i1 to i32
    %c0_i32_0 = arith.constant 0 : i32
    %2 = arith.cmpi ne, %1, %c0_i32_0 : i32
    scf.if %2 {
      %cst_9 = arith.constant 0.000000e+00 : f32
      %15 = vector.broadcast %cst_9 : f32 to vector<128x256xf32>
      %c0_10 = arith.constant 0 : index
      %c0_11 = arith.constant 0 : index
      %16 = vector.load %arg9[%c0_10, %c0_11] : memref<128x256xf32, #tpu.memory_space<vmem>>, vector<128x256xf32>
      tpu.vector_store %arg9[%c0_10, %c0_11], %15 {strides = array<i32>} : memref<128x256xf32, #tpu.memory_space<vmem>>, vector<128x256xf32>,
      %c0_12 = arith.constant 0 : index
      %c0_13 = arith.constant 0 : index
      %17 = vector.load %arg3[%c0_12, %c0_13] : memref<128x256xf32, #tpu.memory_space<vmem>>, vector<128x256xf32>
      %cst_14 = arith.constant dense<0.000000e+00> : vector<128xf32>
      %18 = vector.multi_reduction <add>, %17, %cst_14 [1] : vector<128x256xf32> to vector<128xf32>
      %19 = vector.shape_cast %18 : vector<128xf32> to vector<128x1xf32>
      %cst_15 = arith.constant 2.560000e+02 : f32
      %20 = vector.broadcast %cst_15 : f32 to vector<128x1xf32>
      %21 = arith.divf %19, %20 : vector<128x1xf32>
      %22 = vector.broadcast %21 : vector<128x1xf32> to vector<128x256xf32>
      %23 = arith.subf %17, %22 : vector<128x256xf32>
      %24 = arith.mulf %23, %23 : vector<128x256xf32>
      %cst_16 = arith.constant dense<0.000000e+00> : vector<128xf32>
      %25 = vector.multi_reduction <add>, %24, %cst_16 [1] : vector<128x256xf32> to vector<128xf32>
      %26 = vector.shape_cast %25 : vector<128xf32> to vector<128x1xf32>
      %cst_17 = arith.constant 2.560000e+02 : f32
      %27 = vector.broadcast %cst_17 : f32 to vector<128x1xf32>
      %28 = arith.divf %26, %27 : vector<128x1xf32>
      %29 = vector.broadcast %21 : vector<128x1xf32> to vector<128x256xf32>
      %30 = arith.subf %17, %29 : vector<128x256xf32>
      %cst_18 = arith.constant 9.99999974E-6 : f32
      %31 = vector.broadcast %cst_18 : f32 to vector<128x1xf32>
      %32 = arith.addf %28, %31 : vector<128x1xf32>
      %33 = math.rsqrt %32 : vector<128x1xf32>
      %34 = vector.broadcast %33 : vector<128x1xf32> to vector<128x256xf32>
      %35 = arith.mulf %30, %34 : vector<128x256xf32>
      %c0_19 = arith.constant 0 : index
      %c0_20 = arith.constant 0 : index
      %36 = vector.load %arg4[%c0_19, %c0_20] : memref<1x256xf32, #tpu.memory_space<vmem>>, vector<1x256xf32>
      %37 = vector.broadcast %36 : vector<1x256xf32> to vector<128x256xf32>
      %38 = arith.mulf %35, %37 : vector<128x256xf32>
      %c0_21 = arith.constant 0 : index
      %c0_22 = arith.constant 0 : index
      %39 = vector.load %arg5[%c0_21, %c0_22] : memref<1x256xf32, #tpu.memory_space<vmem>>, vector<1x256xf32>
      %40 = vector.broadcast %39 : vector<1x256xf32> to vector<128x256xf32>
      %41 = arith.addf %38, %40 : vector<128x256xf32>
      %42 = arith.truncf %41 : vector<128x256xf32> to vector<128x256xbf16>
      %c0_23 = arith.constant 0 : index
      %c0_24 = arith.constant 0 : index
      %43 = vector.load %arg10[%c0_23, %c0_24] : memref<128x256xbf16, #tpu.memory_space<vmem>>, vector<128x256xbf16>
      tpu.vector_store %arg10[%c0_23, %c0_24], %42 {strides = array<i32>} : memref<128x256xbf16, #tpu.memory_space<vmem>>, vector<128x256xbf16>,
    } else {
    }
    %c256_i32 = arith.constant 256 : i32
    %3 = arith.muli %arg2, %c256_i32 : i32
    %4 = tpu.assume_multiple %3, 256 : i32
    %c0 = arith.constant 0 : index
    %c0_1 = arith.constant 0 : index
    %5 = vector.load %arg9[%c0, %c0_1] : memref<128x256xf32, #tpu.memory_space<vmem>>, vector<128x256xf32>
    %c0_2 = arith.constant 0 : index
    %6 = arith.index_cast %4 : i32 to index
    %7 = vector.load %arg10[%c0_2, %6] : memref<128x256xbf16, #tpu.memory_space<vmem>>, vector<128x256xbf16>
    %c0_3 = arith.constant 0 : index
    %c0_4 = arith.constant 0 : index
    %8 = vector.load %arg6[%c0_3, %c0_4] : memref<256x256xbf16, #tpu.memory_space<vmem>>, vector<256x256xbf16>
    %cst = arith.constant dense<0.000000e+00> : vector<128x256xf32>
    %9 = tpu.matmul %7, %8, %cst {dimension_numbers = #tpu.dot_dimension_numbers<[1], [0], [0], [1], [0, 0, 1, 1], [], []>} : vector<128x256xbf16>, vector<256x256xbf16>, vector<128x256xf32> -> vector<128x256xf32>
    %10 = arith.addf %5, %9 : vector<128x256xf32>
    %c0_5 = arith.constant 0 : index
    %c0_6 = arith.constant 0 : index
    %11 = vector.load %arg9[%c0_5, %c0_6] : memref<128x256xf32, #tpu.memory_space<vmem>>, vector<128x256xf32>
    tpu.vector_store %arg9[%c0_5, %c0_6], %10 {strides = array<i32>} : memref<128x256xf32, #tpu.memory_space<vmem>>, vector<128x256xf32>,
    %c0_i32_7 = arith.constant 0 : i32
    %12 = arith.cmpi eq, %arg2, %c0_i32_7 : i32
    %13 = arith.extui %12 : i1 to i32
    %c0_i32_8 = arith.constant 0 : i32
    %14 = arith.cmpi ne, %13, %c0_i32_8 : i32
    scf.if %14 {
      %c0_9 = arith.constant 0 : index
      %c0_10 = arith.constant 0 : index
      %15 = vector.load %arg9[%c0_9, %c0_10] : memref<128x256xf32, #tpu.memory_space<vmem>>, vector<128x256xf32>
      %c0_11 = arith.constant 0 : index
      %c0_12 = arith.constant 0 : index
      %16 = vector.load %arg7[%c0_11, %c0_12] : memref<1x256xf32, #tpu.memory_space<vmem>>, vector<1x256xf32>
      %17 = vector.broadcast %16 : vector<1x256xf32> to vector<128x256xf32>
      %18 = arith.addf %15, %17 : vector<128x256xf32>
      %19 = arith.truncf %18 : vector<128x256xf32> to vector<128x256xbf16>
      %c0_13 = arith.constant 0 : index
      %c0_14 = arith.constant 0 : index
      %20 = vector.load %arg8[%c0_13, %c0_14] : memref<128x256xbf16, #tpu.memory_space<vmem>>, vector<128x256xbf16>
      tpu.vector_store %arg8[%c0_13, %c0_14], %19 {strides = array<i32>} : memref<128x256xbf16, #tpu.memory_space<vmem>>, vector<128x256xbf16>,
    } else {
    }
    return
  }
  func.func @transform_0(%arg0: i32, %arg1: i32, %arg2: i32) -> (i32, i32) {
    %c0_i32 = arith.constant 0 : i32
    %c0_i32_0 = arith.constant 0 : i32
    return %arg0, %c0_i32 : i32, i32
  }
  func.func @transform_1(%arg0: i32, %arg1: i32, %arg2: i32) -> (i32, i32) {
    %c0_i32 = arith.constant 0 : i32
    %c0_i32_0 = arith.constant 0 : i32
    %c0_i32_1 = arith.constant 0 : i32
    return %c0_i32, %c0_i32_0 : i32, i32
  }
  func.func @transform_2(%arg0: i32, %arg1: i32, %arg2: i32) -> (i32, i32) {
    %c0_i32 = arith.constant 0 : i32
    %c0_i32_0 = arith.constant 0 : i32
    %c0_i32_1 = arith.constant 0 : i32
    return %c0_i32, %c0_i32_0 : i32, i32
  }
  func.func @transform_3(%arg0: i32, %arg1: i32, %arg2: i32) -> (i32, i32) {
    %c0_i32 = arith.constant 0 : i32
    return %arg2, %arg1 : i32, i32
  }
  func.func @transform_4(%arg0: i32, %arg1: i32, %arg2: i32) -> (i32, i32) {
    %c0_i32 = arith.constant 0 : i32
    %c0_i32_0 = arith.constant 0 : i32
    return %c0_i32, %arg1 : i32, i32
  }
  func.func @transform_5(%arg0: i32, %arg1: i32, %arg2: i32) -> (i32, i32) {
    %c0_i32 = arith.constant 0 : i32
    return %arg0, %arg1 : i32, i32
  }
}

</mosaic_0001>

<llo_original>
// kernel: tpu_custom_call.1
$region0: #{tpu_custom_call.1}
  #allocation0 [shape = 'u32[]', space=smem, size = 0x4, offset = 0x4, fixed_abs, tag = 'smem constant byte address 0x4 - core index']
  #allocation1 [shape = 'u32[72,128]{1,0:T(1,128)}', space=vmem, size = 0x9000, scoped, tag = 'internal scratch']
  #allocation2 [shape = 'f32[128,256]{1,0:T(8,128)}', space=vmem, size = 0x20000, scoped, tag = 'scratch operand']
  #allocation3 [shape = 'bf16[128,256]{1,0:T(8,128)(2,1)}', space=vmem, size = 0x10000, scoped, tag = 'scratch operand']
  %s0 = inlined_call_operand.hbm [shape: f32[128,256], index: 0, kind: input, shape index: {}]
  %s1 = inlined_call_operand.hbm [shape: f32[1,256], index: 1, kind: input, shape index: {}]
  %s2 = inlined_call_operand.hbm [shape: f32[1,256], index: 2, kind: input, shape index: {}]
  %s3 = inlined_call_operand.hbm [shape: bf16[256,768], index: 3, kind: input, shape index: {}]
  %s4 = inlined_call_operand.hbm [shape: f32[1,768], index: 4, kind: input, shape index: {}]
  %s5 = inlined_call_operand.hbm [shape: bf16[128,768], index: 5, kind: output, shape index: {}]
  %s6 = sld [smem:[#allocation0]]
  $region81: #{tpu_custom_call.1} parent=0
    _
  %s8 = ssub.s32 1, %s6
  %s9 = scalar_select 0, %s8, %s6
  $region1: #{tpu_custom_call.1} parent=0
    #allocation4 [shape = 'u8[131072]{0}', space=vmem, size = 0x20000, scoped, tag = 'input window, operand 0, single buffered']
    #allocation5 [shape = 's32[2]{0}', space=sflag, size = 0x8, scoped, tag = 'scoped memory for tpu_custom_call.1']
    #allocation6 [shape = 's32[2]{0}', space=sflag, size = 0x8, scoped, tag = 'scoped memory for tpu_custom_call.1']
    #allocation7 [shape = 'u8[1024]{0}', space=vmem, size = 0x400, scoped, tag = 'input window, operand 1, single buffered']
    #allocation8 [shape = 's32[1]{0}', space=sflag, size = 0x4, scoped, tag = 'scoped memory for tpu_custom_call.1']
    #allocation9 [shape = 'u8[1024]{0}', space=vmem, size = 0x400, scoped, tag = 'input window, operand 2, single buffered']
    #allocation10 [shape = 'u8[262144]{0}', space=vmem, size = 0x40000, scoped, tag = 'input window, operand 3']
    #allocation11 [shape = 's32[2]{0}', space=sflag, size = 0x8, scoped, tag = 'scoped memory for tpu_custom_call.1']
    #allocation12 [shape = 'u8[2048]{0}', space=vmem, size = 0x800, scoped, tag = 'input window, operand 4']
    #allocation13 [shape = 'u8[131072]{0}', space=vmem, size = 0x20000, scoped, tag = 'output window, operand 0']
    %10 = vsyncpa [#allocation5], 0
    %11 = vsyncpa [#allocation8], 0
    %12 = vsyncpa [#allocation11], 0
    %s13 = scalar_lea.sflag [#allocation11], 1
    %14 = vsyncpa %s13, 0
    %15 = vsyncpa [#allocation6], 0
    %s16 = scalar_lea.sflag [#allocation6], 1
    %17 = vsyncpa %s16, 0
    loop: start=0, step=1, limit=5
    $region2: #{tpu_custom_call.1} parent=1 // loop_pre_header
      _
    $region3: #{tpu_custom_call.1} parent=1 // loop_header
      %s19 = sphi 0, %s23
      %p20 = scmp.ge.s32.totalorder %s19, 5
      %s26 = sphi 0, %s45
      %s27 = sphi 0, %s41
      %s28 = sphi 0, %s37
      %s29 = sphi 0, %s26
      %s30 = sphi 0, %s27
      %s31 = sphi 0, %s28
      %s32 = sphi 0, %s29
      %s33 = sphi 0, %s30
      %s34 = sphi 0, %s31
      %s48 = sphi 0, %s50
      %s51 = sphi 0, %s48
      %s52 = sphi 0, %s51
      %s68 = sphi 0, %s52
      %s72 = sphi 0, %s72
      %s74 = sphi 0, %s72
      %s75 = sphi 0, %s74
      %s89 = sphi 0, %s75
      %s93 = sphi 0, %s93
      %s95 = sphi 0, %s93
      %s96 = sphi 0, %s95
      %s110 = sphi 0, %s96
      %s118 = sphi 0, %s120
      %s121 = sphi 0, %s118
      %s122 = sphi 0, %s121
      %s138 = sphi 0, %s122
      %s144 = sphi 0, %s146
      %s147 = sphi 0, %s144
      %s148 = sphi 0, %s147
      %s164 = sphi 0, %s148
      %s172 = sphi 0, %s174
      %s175 = sphi 0, %s172
      %s176 = sphi 0, %s175
      %s192 = sphi 0, %s176
    $region4: #{tpu_custom_call.1} parent=1 // loop_header_branch
      %22 = sbr.rel (%p20) target = $region8
    $region5: #{tpu_custom_call.1} parent=1 // loop_body
      %s24 = ssub.s32 %s19, 1
      %s25 = ssub.s32 %s19, 2
      %s35 = sadd.s32 1, %s28
      %p36 = scmp.ge.s32.totalorder %s35, 1
      %s37 = scalar_select %p36, 0, %s35
      %s38 = sadd.s32 1, %s27
      %s39 = scalar_select %p36, %s38, %s27
      %p40 = scmp.ge.s32.totalorder %s39, 3
      %s41 = scalar_select %p40, 0, %s39
      %s42 = sadd.s32 1, %s26
      %s43 = scalar_select %p40, %s42, %s26
      %p44 = scmp.ge.s32.totalorder %s43, 1
      %s45 = scalar_select %p44, 0, %s43
      %s46 = ssub.s32 %s26, %s45
      %p47 = scmp.eq.s32.totalorder %s46, 0
      %s49 = sadd.s32 %s48, 1
      %s50 = scalar_select %p47, %s48, %s49
      %p53 = pneg %p47
      %p54 = scmp.eq.s32.totalorder %s19, 2
      %p55 = por %p53, %p54
      %p56 = scmp.ne.s32.totalorder %s48, %s51
      %p57 = scmp.eq.s32.totalorder %s19, 0
      %p58 = por %p56, %p57
      %p59 = scmp.ne.s32.totalorder %s48, %s51
      %p60 = scmp.eq.s32.totalorder %s24, 2
      %p61 = por %p59, %p60
      %p62 = scmp.ne.s32.totalorder %s51, %s52
      %p63 = scmp.eq.s32.totalorder %s24, 0
      %p64 = por %p62, %p63
      %p65 = scmp.ne.s32.totalorder %s51, %s52
      %p66 = scmp.eq.s32.totalorder %s25, 2
      %p67 = por %p65, %p66
      %p69 = scmp.ne.s32.totalorder %s52, %s68
      %p70 = scmp.eq.s32.totalorder %s25, 0
      %p71 = por %p69, %p70
      %s73 = sadd.s32 %s72, 1
      %p76 = scmp.eq.s32.totalorder %s19, 2
      %p77 = scmp.ne.s32.totalorder %s72, %s74
      %p78 = scmp.eq.s32.totalorder %s19, 0
      %p79 = por %p77, %p78
      %p80 = scmp.ne.s32.totalorder %s72, %s74
      %p81 = scmp.eq.s32.totalorder %s24, 2
      %p82 = por %p80, %p81
      %p83 = scmp.ne.s32.totalorder %s74, %s75
      %p84 = scmp.eq.s32.totalorder %s24, 0
      %p85 = por %p83, %p84
      %p86 = scmp.ne.s32.totalorder %s74, %s75
      %p87 = scmp.eq.s32.totalorder %s25, 2
      %p88 = por %p86, %p87
      %p90 = scmp.ne.s32.totalorder %s75, %s89
      %p91 = scmp.eq.s32.totalorder %s25, 0
      %p92 = por %p90, %p91
      %s94 = sadd.s32 %s93, 1
      %p97 = scmp.eq.s32.totalorder %s19, 2
      %p98 = scmp.ne.s32.totalorder %s93, %s95
      %p99 = scmp.eq.s32.totalorder %s19, 0
      %p100 = por %p98, %p99
      %p101 = scmp.ne.s32.totalorder %s93, %s95
      %p102 = scmp.eq.s32.totalorder %s24, 2
      %p103 = por %p101, %p102
      %p104 = scmp.ne.s32.totalorder %s95, %s96
      %p105 = scmp.eq.s32.totalorder %s24, 0
      %p106 = por %p104, %p105
      %p107 = scmp.ne.s32.totalorder %s95, %s96
      %p108 = scmp.eq.s32.totalorder %s25, 2
      %p109 = por %p107, %p108
      %p111 = scmp.ne.s32.totalorder %s96, %s110
      %p112 = scmp.eq.s32.totalorder %s25, 0
      %p113 = por %p111, %p112
      %s114 = ssub.s32 %s28, %s37
      %s115 = ssub.s32 %s27, %s41
      %s116 = sor.u32 %s114, %s115
      %p117 = scmp.eq.s32.totalorder %s116, 0
      %s119 = sadd.s32 %s118, 1
      %s120 = scalar_select %p117, %s118, %s119
      %p123 = pneg %p117
      %p124 = scmp.eq.s32.totalorder %s19, 2
      %p125 = por %p123, %p124
      %p126 = scmp.ne.s32.totalorder %s118, %s121
      %p127 = scmp.eq.s32.totalorder %s19, 0
      %p128 = por %p126, %p127
      %p129 = scmp.ne.s32.totalorder %s118, %s121
      %p130 = scmp.eq.s32.totalorder %s24, 2
      %p131 = por %p129, %p130
      %p132 = scmp.ne.s32.totalorder %s121, %s122
      %p133 = scmp.eq.s32.totalorder %s24, 0
      %p134 = por %p132, %p133
      %p135 = scmp.ne.s32.totalorder %s121, %s122
      %p136 = scmp.eq.s32.totalorder %s25, 2
      %p137 = por %p135, %p136
      %p139 = scmp.ne.s32.totalorder %s122, %s138
      %p140 = scmp.eq.s32.totalorder %s25, 0
      %p141 = por %p139, %p140
      %s142 = ssub.s32 %s27, %s41
      %p143 = scmp.eq.s32.totalorder %s142, 0
      %s145 = sadd.s32 %s144, 1
      %s146 = scalar_select %p143, %s144, %s145
      %p149 = pneg %p143
      %p150 = scmp.eq.s32.totalorder %s19, 2
      %p151 = por %p149, %p150
      %p152 = scmp.ne.s32.totalorder %s144, %s147
      %p153 = scmp.eq.s32.totalorder %s19, 0
      %p154 = por %p152, %p153
      %p155 = scmp.ne.s32.totalorder %s144, %s147
      %p156 = scmp.eq.s32.totalorder %s24, 2
      %p157 = por %p155, %p156
      %p158 = scmp.ne.s32.totalorder %s147, %s148
      %p159 = scmp.eq.s32.totalorder %s24, 0
      %p160 = por %p158, %p159
      %p161 = scmp.ne.s32.totalorder %s147, %s148
      %p162 = scmp.eq.s32.totalorder %s25, 2
      %p163 = por %p161, %p162
      %p165 = scmp.ne.s32.totalorder %s148, %s164
      %p166 = scmp.eq.s32.totalorder %s25, 0
      %p167 = por %p165, %p166
      %s168 = ssub.s32 %s26, %s45
      %s169 = ssub.s32 %s27, %s41
      %s170 = sor.u32 %s168, %s169
      %p171 = scmp.eq.s32.totalorder %s170, 0
      %s173 = sadd.s32 %s172, 1
      %s174 = scalar_select %p171, %s172, %s173
      %p177 = pneg %p171
      %p178 = scmp.eq.s32.totalorder %s19, 2
      %p179 = por %p177, %p178
      %p180 = scmp.ne.s32.totalorder %s172, %s175
      %p181 = scmp.eq.s32.totalorder %s19, 0
      %p182 = por %p180, %p181
      %p183 = scmp.ne.s32.totalorder %s172, %s175
      %p184 = scmp.eq.s32.totalorder %s24, 2
      %p185 = por %p183, %p184
      %p186 = scmp.ne.s32.totalorder %s175, %s176
      %p187 = scmp.eq.s32.totalorder %s24, 0
      %p188 = por %p186, %p187
      %p189 = scmp.ne.s32.totalorder %s175, %s176
      %p190 = scmp.eq.s32.totalorder %s25, 2
      %p191 = por %p189, %p190
      %p193 = scmp.ne.s32.totalorder %s176, %s192
      %p194 = scmp.eq.s32.totalorder %s25, 0
      %p195 = por %p193, %p194
      %p196 = scmp.le.s32.totalorder 1, %s19
      %p197 = scmp.lt.s32.totalorder %s19, 4
      %p198 = pnand %p196, %p197
      %p199 = pneg %p198
      // Predicated region
      $region9: #{tpu_custom_call.1} parent=5 // pred_check
        _
      $region10: #{tpu_custom_call.1} parent=5 // pred_check_branch
        %201 = sbr.rel (%p198) target = $region12
      $region11: #{tpu_custom_call.1} parent=5 // pred_region
        %s202 = ssub.s32 %s19, 1
        // Predicated region
        $region13: #{tpu_custom_call.1} parent=11 // pred_check
          %p203 = pneg %p64
        $region14: #{tpu_custom_call.1} parent=11 // pred_check_branch
          %205 = sbr.rel (%p203) target = $region16
        $region15: #{tpu_custom_call.1} parent=11 // pred_region
          %s206 = smul.u32 16, %s29
          %208 = vsyncadd [#allocation5], 0
          %s209 = smul.addr %s206, 2
          %s210 = smul.addr %s209, 8
          %s211 = scalar_lea.hbm %s0, %s210
          %s212 = sshll.u32 %s211, 4
          %s213 = int_to_ptr.hbm [resolvable:$true] %s212
          %s214 = sshll.u32 [#allocation4], 4
          %s215 = int_to_ptr.vmem [resolvable:$true] %s214
          %220 = dma.hbm_to_vmem [thread:$0]  %s213, 4096, %s215, [#allocation5], 256, 256, 16
        $region16: #{tpu_custom_call.1} parent=11 // pred_fallthru
          _
        // Predicated region
        $region17: #{tpu_custom_call.1} parent=11 // pred_check
          %p221 = pneg %p85
        $region18: #{tpu_custom_call.1} parent=11 // pred_check_branch
          %223 = sbr.rel (%p221) target = $region20
        $region19: #{tpu_custom_call.1} parent=11 // pred_region
          %225 = vsyncadd [#allocation8], 0
          %s227 = sshll.u32 %s1, 4
          %s228 = int_to_ptr.hbm [resolvable:$true] %s227
          %s229 = sshll.u32 [#allocation7], 4
          %s230 = int_to_ptr.vmem [resolvable:$true] %s229
          %232 = dma.hbm_to_vmem [thread:$0]  %s228, 32, %s230, [#allocation8]
        $region20: #{tpu_custom_call.1} parent=11 // pred_fallthru
          _
        // Predicated region
        $region21: #{tpu_custom_call.1} parent=11 // pred_check
          %p233 = pneg %p106
        $region22: #{tpu_custom_call.1} parent=11 // pred_check_branch
          %235 = sbr.rel (%p233) target = $region24
        $region23: #{tpu_custom_call.1} parent=11 // pred_region
          %237 = vsyncadd [#allocation8], 0
          %s239 = sshll.u32 %s2, 4
          %s240 = int_to_ptr.hbm [resolvable:$true] %s239
          %s241 = sshll.u32 [#allocation9], 4
          %s242 = int_to_ptr.vmem [resolvable:$true] %s241
          %244 = dma.hbm_to_vmem [thread:$0]  %s240, 32, %s242, [#allocation8]
        $region24: #{tpu_custom_call.1} parent=11 // pred_fallthru
          _
      $region12: #{tpu_custom_call.1} parent=5 // pred_fallthru
        _
      %p245 = scmp.lt.s32.totalorder %s19, 3
      // Predicated region
      $region25: #{tpu_custom_call.1} parent=5 // pred_check
        %p246 = pneg %p245
      $region26: #{tpu_custom_call.1} parent=5 // pred_check_branch
        %248 = sbr.rel (%p246) target = $region28
      $region27: #{tpu_custom_call.1} parent=5 // pred_region
        // Predicated region
        $region29: #{tpu_custom_call.1} parent=27 // pred_check
          %p249 = pneg %p128
        $region30: #{tpu_custom_call.1} parent=27 // pred_check_branch
          %251 = sbr.rel (%p249) target = $region32
        $region31: #{tpu_custom_call.1} parent=27 // pred_region
          %s252 = sand.u32 %s19, 1
          %s253 = scalar_lea.sflag [#allocation11], %s252
          %s254 = sand.u32 %s118, 1
          %s255 = smul.addr %s254, 256
          %s256 = scalar_lea.vmem [#allocation10], %s255
          %s257 = smul.u32 32, %s28
          %s258 = smul.u32 2, %s27
          %260 = vsyncadd %s253, 0
          %s261 = smul.addr %s257, 6
          %s262 = sadd.s32 %s258, %s261
          %s263 = smul.addr %s262, 4
          %s264 = scalar_lea.hbm %s3, %s263
          %s265 = sshll.u32 %s264, 4
          %s266 = int_to_ptr.hbm [resolvable:$true] %s265
          %s267 = sshll.u32 %s256, 4
          %s268 = int_to_ptr.vmem [resolvable:$true] %s267
          %273 = dma.hbm_to_vmem [thread:$0]  %s266, 4096, %s268, %s253, 384, 128, 8
        $region32: #{tpu_custom_call.1} parent=27 // pred_fallthru
          _
        // Predicated region
        $region33: #{tpu_custom_call.1} parent=27 // pred_check
          %p274 = pneg %p154
        $region34: #{tpu_custom_call.1} parent=27 // pred_check_branch
          %276 = sbr.rel (%p274) target = $region36
        $region35: #{tpu_custom_call.1} parent=27 // pred_region
          %s277 = sand.u32 %s19, 1
          %s278 = scalar_lea.sflag [#allocation11], %s277
          %s279 = sand.u32 %s144, 1
          %s280 = smul.addr %s279, 2
          %s281 = scalar_lea.vmem [#allocation12], %s280
          %s282 = smul.u32 2, %s27
          %284 = vsyncadd %s278, 0
          %s285 = scalar_lea.hbm %s4, %s282
          %s287 = sshll.u32 %s285, 4
          %s288 = int_to_ptr.hbm [resolvable:$true] %s287
          %s289 = sshll.u32 %s281, 4
          %s290 = int_to_ptr.vmem [resolvable:$true] %s289
          %292 = dma.hbm_to_vmem [thread:$0]  %s288, 32, %s290, %s278
        $region36: #{tpu_custom_call.1} parent=27 // pred_fallthru
          _
      $region28: #{tpu_custom_call.1} parent=5 // pred_fallthru
        _
      %p293 = scmp.le.s32.totalorder 1, %s19
      %p294 = scmp.lt.s32.totalorder %s19, 4
      %p295 = pnand %p293, %p294
      %p296 = pneg %p295
      // Predicated region
      $region37: #{tpu_custom_call.1} parent=5 // pred_check
        _
      $region38: #{tpu_custom_call.1} parent=5 // pred_check_branch
        %298 = sbr.rel (%p295) target = $region40
      $region39: #{tpu_custom_call.1} parent=5 // pred_region
        %s299 = ssub.s32 %s19, 1
        // Predicated region
        $region41: #{tpu_custom_call.1} parent=39 // pred_check
          %p300 = pneg %p64
        $region42: #{tpu_custom_call.1} parent=39 // pred_check_branch
          %302 = sbr.rel (%p300) target = $region44
        $region43: #{tpu_custom_call.1} parent=39 // pred_region
          %304 = dma.done [#allocation5], 4096
        $region44: #{tpu_custom_call.1} parent=39 // pred_fallthru
          _
        // Predicated region
        $region45: #{tpu_custom_call.1} parent=39 // pred_check
          %p305 = pneg %p85
        $region46: #{tpu_custom_call.1} parent=39 // pred_check_branch
          %307 = sbr.rel (%p305) target = $region48
        $region47: #{tpu_custom_call.1} parent=39 // pred_region
          %309 = dma.done [#allocation8], 32
        $region48: #{tpu_custom_call.1} parent=39 // pred_fallthru
          _
        // Predicated region
        $region49: #{tpu_custom_call.1} parent=39 // pred_check
          %p310 = pneg %p106
        $region50: #{tpu_custom_call.1} parent=39 // pred_check_branch
          %312 = sbr.rel (%p310) target = $region52
        $region51: #{tpu_custom_call.1} parent=39 // pred_region
          %314 = dma.done [#allocation8], 32
        $region52: #{tpu_custom_call.1} parent=39 // pred_fallthru
          _
        %s315 = sand.u32 %s24, 1
        %s316 = scalar_lea.sflag [#allocation11], %s315
        %s317 = sand.u32 %s121, 1
        %s318 = smul.addr %s317, 256
        %s319 = scalar_lea.vmem [#allocation10], %s318
        // Predicated region
        $region53: #{tpu_custom_call.1} parent=39 // pred_check
          %p320 = pneg %p134
        $region54: #{tpu_custom_call.1} parent=39 // pred_check_branch
          %322 = sbr.rel (%p320) target = $region56
        $region55: #{tpu_custom_call.1} parent=39 // pred_region
          %324 = dma.done %s316, 4096
        $region56: #{tpu_custom_call.1} parent=39 // pred_fallthru
          _
        %s325 = sand.u32 %s24, 1
        %s326 = scalar_lea.sflag [#allocation11], %s325
        %s327 = sand.u32 %s147, 1
        %s328 = smul.addr %s327, 2
        %s329 = scalar_lea.vmem [#allocation12], %s328
        // Predicated region
        $region57: #{tpu_custom_call.1} parent=39 // pred_check
          %p330 = pneg %p160
        $region58: #{tpu_custom_call.1} parent=39 // pred_check_branch
          %332 = sbr.rel (%p330) target = $region60
        $region59: #{tpu_custom_call.1} parent=39 // pred_region
          %334 = dma.done %s326, 32
        $region60: #{tpu_custom_call.1} parent=39 // pred_fallthru
          _
        %p335 = pneg %p64
        %p336 = pneg %p61
        %p337 = pneg %p85
        %p338 = pneg %p82
        %p339 = pneg %p106
        %p340 = pneg %p103
        %s341 = sand.u32 %s24, 1
        %s342 = scalar_lea.sflag [#allocation11], %s341
        %s343 = sand.u32 %s121, 1
        %s344 = smul.addr %s343, 256
        %s345 = scalar_lea.vmem [#allocation10], %s344
        %p346 = pneg %p134
        %p347 = pneg %p131
        %s348 = sand.u32 %s24, 1
        %s349 = scalar_lea.sflag [#allocation11], %s348
        %s350 = sand.u32 %s147, 1
        %s351 = smul.addr %s350, 2
        %s352 = scalar_lea.vmem [#allocation12], %s351
        %p353 = pneg %p160
        %p354 = pneg %p157
        %p355 = pneg %p188
        %p356 = pneg %p185
        %s357 = sand.u32 %s175, 1
        %s358 = scalar_lea.sflag [#allocation6], %s357
        %s359 = sand.u32 %s175, 1
        %s360 = smul.addr %s359, 128
        %s361 = scalar_lea.vmem [#allocation13], %s360
        %s362 = smul.u32 16, %s29
        %s363 = smul.u32 32, %s31
        %s364 = smul.u32 2, %s30
        %s365 = smul.u32 2, %s30
        %s366 = smul.u32 16, %s29
        %s367 = smul.u32 2, %s30
        %p368 = scmp.eq.s32.totalorder %s31, 0
        // Predicated region
        $region61: #{tpu_custom_call.1} parent=39 // pred_check
          %p369 = pneg %p368
        $region62: #{tpu_custom_call.1} parent=39 // pred_check_branch
          %371 = sbr.rel (%p369) target = $region64
        $region63: #{tpu_custom_call.1} parent=39 // pred_region
          %372 = vst [vmem:[#allocation2] sm:$0xff] 0.0
          %373 = vst [vmem:[#allocation2 + $0x8] sm:$0xff] 0.0
          %374 = vst [vmem:[#allocation2 + $0x10] sm:$0xff] 0.0
          %375 = vst [vmem:[#allocation2 + $0x18] sm:$0xff] 0.0
          %376 = vst [vmem:[#allocation2 + $0x20] sm:$0xff] 0.0
          %377 = vst [vmem:[#allocation2 + $0x28] sm:$0xff] 0.0
          %378 = vst [vmem:[#allocation2 + $0x30] sm:$0xff] 0.0
          %379 = vst [vmem:[#allocation2 + $0x38] sm:$0xff] 0.0
          %380 = vst [vmem:[#allocation2 + $0x40] sm:$0xff] 0.0
          %381 = vst [vmem:[#allocation2 + $0x48] sm:$0xff] 0.0
          %382 = vst [vmem:[#allocation2 + $0x50] sm:$0xff] 0.0
          %383 = vst [vmem:[#allocation2 + $0x58] sm:$0xff] 0.0
          %384 = vst [vmem:[#allocation2 + $0x60] sm:$0xff] 0.0
          %385 = vst [vmem:[#allocation2 + $0x68] sm:$0xff] 0.0
          %386 = vst [vmem:[#allocation2 + $0x70] sm:$0xff] 0.0
          %387 = vst [vmem:[#allocation2 + $0x78] sm:$0xff] 0.0
          %388 = vst [vmem:[#allocation2 + $0x80] sm:$0xff] 0.0
          %389 = vst [vmem:[#allocation2 + $0x88] sm:$0xff] 0.0
          %390 = vst [vmem:[#allocation2 + $0x90] sm:$0xff] 0.0
          %391 = vst [vmem:[#allocation2 + $0x98] sm:$0xff] 0.0
          %392 = vst [vmem:[#allocation2 + $0xa0] sm:$0xff] 0.0
          %393 = vst [vmem:[#allocation2 + $0xa8] sm:$0xff] 0.0
          %394 = vst [vmem:[#allocation2 + $0xb0] sm:$0xff] 0.0
          %395 = vst [vmem:[#allocation2 + $0xb8] sm:$0xff] 0.0
          %396 = vst [vmem:[#allocation2 + $0xc0] sm:$0xff] 0.0
          %397 = vst [vmem:[#allocation2 + $0xc8] sm:$0xff] 0.0
          %398 = vst [vmem:[#allocation2 + $0xd0] sm:$0xff] 0.0
          %399 = vst [vmem:[#allocation2 + $0xd8] sm:$0xff] 0.0
          %400 = vst [vmem:[#allocation2 + $0xe0] sm:$0xff] 0.0
          %401 = vst [vmem:[#allocation2 + $0xe8] sm:$0xff] 0.0
          %402 = vst [vmem:[#allocation2 + $0xf0] sm:$0xff] 0.0
          %403 = vst [vmem:[#allocation2 + $0xf8] sm:$0xff] 0.0
          %v404 = vld [vmem:[#allocation4] sm:$0xff]
          %v405 = vld [vmem:[#allocation4 + $0x8] sm:$0xff]
          %v406 = vld [vmem:[#allocation4 + $0x10] sm:$0xff]
          %v407 = vld [vmem:[#allocation4 + $0x18] sm:$0xff]
          %v408 = vld [vmem:[#allocation4 + $0x20] sm:$0xff]
          %v409 = vld [vmem:[#allocation4 + $0x28] sm:$0xff]
          %v410 = vld [vmem:[#allocation4 + $0x30] sm:$0xff]
          %v411 = vld [vmem:[#allocation4 + $0x38] sm:$0xff]
          %v412 = vld [vmem:[#allocation4 + $0x40] sm:$0xff]
          %v413 = vld [vmem:[#allocation4 + $0x48] sm:$0xff]
          %v414 = vld [vmem:[#allocation4 + $0x50] sm:$0xff]
          %v415 = vld [vmem:[#allocation4 + $0x58] sm:$0xff]
          %v416 = vld [vmem:[#allocation4 + $0x60] sm:$0xff]
          %v417 = vld [vmem:[#allocation4 + $0x68] sm:$0xff]
          %v418 = vld [vmem:[#allocation4 + $0x70] sm:$0xff]
          %v419 = vld [vmem:[#allocation4 + $0x78] sm:$0xff]
          %v420 = vld [vmem:[#allocation4 + $0x80] sm:$0xff]
          %v421 = vld [vmem:[#allocation4 + $0x88] sm:$0xff]
          %v422 = vld [vmem:[#allocation4 + $0x90] sm:$0xff]
          %v423 = vld [vmem:[#allocation4 + $0x98] sm:$0xff]
          %v424 = vld [vmem:[#allocation4 + $0xa0] sm:$0xff]
          %v425 = vld [vmem:[#allocation4 + $0xa8] sm:$0xff]
          %v426 = vld [vmem:[#allocation4 + $0xb0] sm:$0xff]
          %v427 = vld [vmem:[#allocation4 + $0xb8] sm:$0xff]
          %v428 = vld [vmem:[#allocation4 + $0xc0] sm:$0xff]
          %v429 = vld [vmem:[#allocation4 + $0xc8] sm:$0xff]
          %v430 = vld [vmem:[#allocation4 + $0xd0] sm:$0xff]
          %v431 = vld [vmem:[#allocation4 + $0xd8] sm:$0xff]
          %v432 = vld [vmem:[#allocation4 + $0xe0] sm:$0xff]
          %v433 = vld [vmem:[#allocation4 + $0xe8] sm:$0xff]
          %v434 = vld [vmem:[#allocation4 + $0xf0] sm:$0xff]
          %v435 = vld [vmem:[#allocation4 + $0xf8] sm:$0xff]
          %v436 = vadd.f32 %v404, %v405
          %437 = vadd.xlane.f32.xlu0 %v436
          %v438 = vpop.xlane.xlu0 %437
          %v439 = vadd.f32 %v406, %v407
          %440 = vadd.xlane.f32.xlu0 %v439
          %v441 = vpop.xlane.xlu0 %440
          %v442 = vadd.f32 %v408, %v409
          %443 = vadd.xlane.f32.xlu0 %v442
          %v444 = vpop.xlane.xlu0 %443
          %v445 = vadd.f32 %v410, %v411
          %446 = vadd.xlane.f32.xlu0 %v445
          %v447 = vpop.xlane.xlu0 %446
          %v448 = vadd.f32 %v412, %v413
          %449 = vadd.xlane.f32.xlu0 %v448
          %v450 = vpop.xlane.xlu0 %449
          %v451 = vadd.f32 %v414, %v415
          %452 = vadd.xlane.f32.xlu0 %v451
          %v453 = vpop.xlane.xlu0 %452
          %v454 = vadd.f32 %v416, %v417
          %455 = vadd.xlane.f32.xlu0 %v454
          %v456 = vpop.xlane.xlu0 %455
          %v457 = vadd.f32 %v418, %v419
          %458 = vadd.xlane.f32.xlu0 %v457
          %v459 = vpop.xlane.xlu0 %458
          %v460 = vadd.f32 %v420, %v421
          %461 = vadd.xlane.f32.xlu0 %v460
          %v462 = vpop.xlane.xlu0 %461
          %v463 = vadd.f32 %v422, %v423
          %464 = vadd.xlane.f32.xlu0 %v463
          %v465 = vpop.xlane.xlu0 %464
          %v466 = vadd.f32 %v424, %v425
          %467 = vadd.xlane.f32.xlu0 %v466
          %v468 = vpop.xlane.xlu0 %467
          %v469 = vadd.f32 %v426, %v427
          %470 = vadd.xlane.f32.xlu0 %v469
          %v471 = vpop.xlane.xlu0 %470
          %v472 = vadd.f32 %v428, %v429
          %473 = vadd.xlane.f32.xlu0 %v472
          %v474 = vpop.xlane.xlu0 %473
          %v475 = vadd.f32 %v430, %v431
          %476 = vadd.xlane.f32.xlu0 %v475
          %v477 = vpop.xlane.xlu0 %476
          %v478 = vadd.f32 %v432, %v433
          %479 = vadd.xlane.f32.xlu0 %v478
          %v480 = vpop.xlane.xlu0 %479
          %v481 = vadd.f32 %v434, %v435
          %482 = vadd.xlane.f32.xlu0 %v481
          %v483 = vpop.xlane.xlu0 %482
          %v484 = vrcp.pop 256.0
          %v485 = vmul.f32 256.0, %v484
          %v486 = vsub.f32 1.0, %v485
          %v487 = vmul.f32 %v484, %v486
          %v488 = vadd.f32 %v484, %v487
          %vm489 = vweird.f32 %v484
          %v490 = vsel %vm489, %v484, %v488
          %v491 = vmul.f32 %v438, %v490
          %v492 = vmul.f32 %v441, %v490
          %v493 = vmul.f32 %v444, %v490
          %v494 = vmul.f32 %v447, %v490
          %v495 = vmul.f32 %v450, %v490
          %v496 = vmul.f32 %v453, %v490
          %v497 = vmul.f32 %v456, %v490
          %v498 = vmul.f32 %v459, %v490
          %v499 = vmul.f32 %v462, %v490
          %v500 = vmul.f32 %v465, %v490
          %v501 = vmul.f32 %v468, %v490
          %v502 = vmul.f32 %v471, %v490
          %v503 = vmul.f32 %v474, %v490
          %v504 = vmul.f32 %v477, %v490
          %v505 = vmul.f32 %v480, %v490
          %v506 = vmul.f32 %v483, %v490
          %v507 = vsub.f32 %v404, %v491
          %v508 = vsub.f32 %v405, %v491
          %v509 = vsub.f32 %v406, %v492
          %v510 = vsub.f32 %v407, %v492
          %v511 = vsub.f32 %v408, %v493
          %v512 = vsub.f32 %v409, %v493
          %v513 = vsub.f32 %v410, %v494
          %v514 = vsub.f32 %v411, %v494
          %v515 = vsub.f32 %v412, %v495
          %v516 = vsub.f32 %v413, %v495
          %v517 = vsub.f32 %v414, %v496
          %v518 = vsub.f32 %v415, %v496
          %v519 = vsub.f32 %v416, %v497
          %v520 = vsub.f32 %v417, %v497
          %v521 = vsub.f32 %v418, %v498
          %v522 = vsub.f32 %v419, %v498
          %v523 = vsub.f32 %v420, %v499
          %v524 = vsub.f32 %v421, %v499
          %v525 = vsub.f32 %v422, %v500
          %v526 = vsub.f32 %v423, %v500
          %v527 = vsub.f32 %v424, %v501
          %v528 = vsub.f32 %v425, %v501
          %v529 = vsub.f32 %v426, %v502
          %v530 = vsub.f32 %v427, %v502
          %v531 = vsub.f32 %v428, %v503
          %v532 = vsub.f32 %v429, %v503
          %v533 = vsub.f32 %v430, %v504
          %v534 = vsub.f32 %v431, %v504
          %v535 = vsub.f32 %v432, %v505
          %v536 = vsub.f32 %v433, %v505
          %v537 = vsub.f32 %v434, %v506
          %v538 = vsub.f32 %v435, %v506
          %v539 = vmul.f32 %v507, %v507
          %v540 = vmul.f32 %v508, %v508
          %v541 = vmul.f32 %v509, %v509
          %v542 = vmul.f32 %v510, %v510
          %v543 = vmul.f32 %v511, %v511
          %v544 = vmul.f32 %v512, %v512
          %v545 = vmul.f32 %v513, %v513
          %v546 = vmul.f32 %v514, %v514
          %v547 = vmul.f32 %v515, %v515
          %v548 = vmul.f32 %v516, %v516
          %v549 = vmul.f32 %v517, %v517
          %v550 = vmul.f32 %v518, %v518
          %v551 = vmul.f32 %v519, %v519
          %v552 = vmul.f32 %v520, %v520
          %v553 = vmul.f32 %v521, %v521
          %v554 = vmul.f32 %v522, %v522
          %v555 = vmul.f32 %v523, %v523
          %v556 = vmul.f32 %v524, %v524
          %v557 = vmul.f32 %v525, %v525
          %v558 = vmul.f32 %v526, %v526
          %v559 = vmul.f32 %v527, %v527
          %v560 = vmul.f32 %v528, %v528
          %v561 = vmul.f32 %v529, %v529
          %v562 = vmul.f32 %v530, %v530
          %v563 = vmul.f32 %v531, %v531
          %v564 = vmul.f32 %v532, %v532
          %v565 = vmul.f32 %v533, %v533
          %v566 = vmul.f32 %v534, %v534
          %v567 = vmul.f32 %v535, %v535
          %v568 = vmul.f32 %v536, %v536
          %v569 = vmul.f32 %v537, %v537
          %v570 = vmul.f32 %v538, %v538
          %v571 = vadd.f32 %v539, %v540
          %572 = vadd.xlane.f32.xlu0 %v571
          %v573 = vpop.xlane.xlu0 %572
          %v574 = vadd.f32 %v541, %v542
          %575 = vadd.xlane.f32.xlu0 %v574
          %v576 = vpop.xlane.xlu0 %575
          %v577 = vadd.f32 %v543, %v544
          %578 = vadd.xlane.f32.xlu0 %v577
          %v579 = vpop.xlane.xlu0 %578
          %v580 = vadd.f32 %v545, %v546
          %581 = vadd.xlane.f32.xlu0 %v580
          %v582 = vpop.xlane.xlu0 %581
          %v583 = vadd.f32 %v547, %v548
          %584 = vadd.xlane.f32.xlu0 %v583
          %v585 = vpop.xlane.xlu0 %584
          %v586 = vadd.f32 %v549, %v550
          %587 = vadd.xlane.f32.xlu0 %v586
          %v588 = vpop.xlane.xlu0 %587
          %v589 = vadd.f32 %v551, %v552
          %590 = vadd.xlane.f32.xlu0 %v589
          %v591 = vpop.xlane.xlu0 %590
          %v592 = vadd.f32 %v553, %v554
          %593 = vadd.xlane.f32.xlu0 %v592
          %v594 = vpop.xlane.xlu0 %593
          %v595 = vadd.f32 %v555, %v556
          %596 = vadd.xlane.f32.xlu0 %v595
          %v597 = vpop.xlane.xlu0 %596
          %v598 = vadd.f32 %v557, %v558
          %599 = vadd.xlane.f32.xlu0 %v598
          %v600 = vpop.xlane.xlu0 %599
          %v601 = vadd.f32 %v559, %v560
          %602 = vadd.xlane.f32.xlu0 %v601
          %v603 = vpop.xlane.xlu0 %602
          %v604 = vadd.f32 %v561, %v562
          %605 = vadd.xlane.f32.xlu0 %v604
          %v606 = vpop.xlane.xlu0 %605
          %v607 = vadd.f32 %v563, %v564
          %608 = vadd.xlane.f32.xlu0 %v607
          %v609 = vpop.xlane.xlu0 %608
          %v610 = vadd.f32 %v565, %v566
          %611 = vadd.xlane.f32.xlu0 %v610
          %v612 = vpop.xlane.xlu0 %611
          %v613 = vadd.f32 %v567, %v568
          %614 = vadd.xlane.f32.xlu0 %v613
          %v615 = vpop.xlane.xlu0 %614
          %v616 = vadd.f32 %v569, %v570
          %617 = vadd.xlane.f32.xlu0 %v616
          %v618 = vpop.xlane.xlu0 %617
          %v619 = vmul.f32 %v573, %v490
          %v620 = vmul.f32 %v576, %v490
          %v621 = vmul.f32 %v579, %v490
          %v622 = vmul.f32 %v582, %v490
          %v623 = vmul.f32 %v585, %v490
          %v624 = vmul.f32 %v588, %v490
          %v625 = vmul.f32 %v591, %v490
          %v626 = vmul.f32 %v594, %v490
          %v627 = vmul.f32 %v597, %v490
          %v628 = vmul.f32 %v600, %v490
          %v629 = vmul.f32 %v603, %v490
          %v630 = vmul.f32 %v606, %v490
          %v631 = vmul.f32 %v609, %v490
          %v632 = vmul.f32 %v612, %v490
          %v633 = vmul.f32 %v615, %v490
          %v634 = vmul.f32 %v618, %v490
          %v635 = vadd.f32 %v619, 1e-05
          %v636 = vadd.f32 %v620, 1e-05
          %v637 = vadd.f32 %v621, 1e-05
          %v638 = vadd.f32 %v622, 1e-05
          %v639 = vadd.f32 %v623, 1e-05
          %v640 = vadd.f32 %v624, 1e-05
          %v641 = vadd.f32 %v625, 1e-05
          %v642 = vadd.f32 %v626, 1e-05
          %v643 = vadd.f32 %v627, 1e-05
          %v644 = vadd.f32 %v628, 1e-05
          %v645 = vadd.f32 %v629, 1e-05
          %v646 = vadd.f32 %v630, 1e-05
          %v647 = vadd.f32 %v631, 1e-05
          %v648 = vadd.f32 %v632, 1e-05
          %v649 = vadd.f32 %v633, 1e-05
          %v650 = vadd.f32 %v634, 1e-05
          %v651 = vrsqrt.pop %v635
          %v652 = vmul.f32 %v651, %v635
          %v653 = vmul.f32 %v652, %v651
          %v654 = vmul.f32 0.5, %v653
          %v655 = vsub.f32 1.5, %v654
          %v656 = vmul.f32 %v651, %v655
          %vm657 = vweird.f32 %v635
          %vm658 = vweird.f32 %v651
          %vm659 = vmor %vm657, %vm658
          %v660 = vsel %vm659, %v651, %v656
          %v661 = vrsqrt.pop %v636
          %v662 = vmul.f32 %v661, %v636
          %v663 = vmul.f32 %v662, %v661
          %v664 = vmul.f32 0.5, %v663
          %v665 = vsub.f32 1.5, %v664
          %v666 = vmul.f32 %v661, %v665
          %vm667 = vweird.f32 %v636
          %vm668 = vweird.f32 %v661
          %vm669 = vmor %vm667, %vm668
          %v670 = vsel %vm669, %v661, %v666
          %v671 = vrsqrt.pop %v637
          %v672 = vmul.f32 %v671, %v637
          %v673 = vmul.f32 %v672, %v671
          %v674 = vmul.f32 0.5, %v673
          %v675 = vsub.f32 1.5, %v674
          %v676 = vmul.f32 %v671, %v675
          %vm677 = vweird.f32 %v637
          %vm678 = vweird.f32 %v671
          %vm679 = vmor %vm677, %vm678
          %v680 = vsel %vm679, %v671, %v676
          %v681 = vrsqrt.pop %v638
          %v682 = vmul.f32 %v681, %v638
          %v683 = vmul.f32 %v682, %v681
          %v684 = vmul.f32 0.5, %v683
          %v685 = vsub.f32 1.5, %v684
          %v686 = vmul.f32 %v681, %v685
          %vm687 = vweird.f32 %v638
          %vm688 = vweird.f32 %v681
          %vm689 = vmor %vm687, %vm688
          %v690 = vsel %vm689, %v681, %v686
          %v691 = vrsqrt.pop %v639
          %v692 = vmul.f32 %v691, %v639
          %v693 = vmul.f32 %v692, %v691
          %v694 = vmul.f32 0.5, %v693
          %v695 = vsub.f32 1.5, %v694
          %v696 = vmul.f32 %v691, %v695
          %vm697 = vweird.f32 %v639
          %vm698 = vweird.f32 %v691
          %vm699 = vmor %vm697, %vm698
          %v700 = vsel %vm699, %v691, %v696
          %v701 = vrsqrt.pop %v640
          %v702 = vmul.f32 %v701, %v640
          %v703 = vmul.f32 %v702, %v701
          %v704 = vmul.f32 0.5, %v703
          %v705 = vsub.f32 1.5, %v704
          %v706 = vmul.f32 %v701, %v705
          %vm707 = vweird.f32 %v640
          %vm708 = vweird.f32 %v701
          %vm709 = vmor %vm707, %vm708
          %v710 = vsel %vm709, %v701, %v706
          %v711 = vrsqrt.pop %v641
          %v712 = vmul.f32 %v711, %v641
          %v713 = vmul.f32 %v712, %v711
          %v714 = vmul.f32 0.5, %v713
          %v715 = vsub.f32 1.5, %v714
          %v716 = vmul.f32 %v711, %v715
          %vm717 = vweird.f32 %v641
          %vm718 = vweird.f32 %v711
          %vm719 = vmor %vm717, %vm718
          %v720 = vsel %vm719, %v711, %v716
          %v721 = vrsqrt.pop %v642
          %v722 = vmul.f32 %v721, %v642
          %v723 = vmul.f32 %v722, %v721
          %v724 = vmul.f32 0.5, %v723
          %v725 = vsub.f32 1.5, %v724
          %v726 = vmul.f32 %v721, %v725
          %vm727 = vweird.f32 %v642
          %vm728 = vweird.f32 %v721
          %vm729 = vmor %vm727, %vm728
          %v730 = vsel %vm729, %v721, %v726
          %v731 = vrsqrt.pop %v643
          %v732 = vmul.f32 %v731, %v643
          %v733 = vmul.f32 %v732, %v731
          %v734 = vmul.f32 0.5, %v733
          %v735 = vsub.f32 1.5, %v734
          %v736 = vmul.f32 %v731, %v735
          %vm737 = vweird.f32 %v643
          %vm738 = vweird.f32 %v731
          %vm739 = vmor %vm737, %vm738
          %v740 = vsel %vm739, %v731, %v736
          %v741 = vrsqrt.pop %v644
          %v742 = vmul.f32 %v741, %v644
          %v743 = vmul.f32 %v742, %v741
          %v744 = vmul.f32 0.5, %v743
          %v745 = vsub.f32 1.5, %v744
          %v746 = vmul.f32 %v741, %v745
          %vm747 = vweird.f32 %v644
          %vm748 = vweird.f32 %v741
          %vm749 = vmor %vm747, %vm748
          %v750 = vsel %vm749, %v741, %v746
          %v751 = vrsqrt.pop %v645
          %v752 = vmul.f32 %v751, %v645
          %v753 = vmul.f32 %v752, %v751
          %v754 = vmul.f32 0.5, %v753
          %v755 = vsub.f32 1.5, %v754
          %v756 = vmul.f32 %v751, %v755
          %vm757 = vweird.f32 %v645
          %vm758 = vweird.f32 %v751
          %vm759 = vmor %vm757, %vm758
          %v760 = vsel %vm759, %v751, %v756
          %v761 = vrsqrt.pop %v646
          %v762 = vmul.f32 %v761, %v646
          %v763 = vmul.f32 %v762, %v761
          %v764 = vmul.f32 0.5, %v763
          %v765 = vsub.f32 1.5, %v764
          %v766 = vmul.f32 %v761, %v765
          %vm767 = vweird.f32 %v646
          %vm768 = vweird.f32 %v761
          %vm769 = vmor %vm767, %vm768
          %v770 = vsel %vm769, %v761, %v766
          %v771 = vrsqrt.pop %v647
          %v772 = vmul.f32 %v771, %v647
          %v773 = vmul.f32 %v772, %v771
          %v774 = vmul.f32 0.5, %v773
          %v775 = vsub.f32 1.5, %v774
          %v776 = vmul.f32 %v771, %v775
          %vm777 = vweird.f32 %v647
          %vm778 = vweird.f32 %v771
          %vm779 = vmor %vm777, %vm778
          %v780 = vsel %vm779, %v771, %v776
          %v781 = vrsqrt.pop %v648
          %v782 = vmul.f32 %v781, %v648
          %v783 = vmul.f32 %v782, %v781
          %v784 = vmul.f32 0.5, %v783
          %v785 = vsub.f32 1.5, %v784
          %v786 = vmul.f32 %v781, %v785
          %vm787 = vweird.f32 %v648
          %vm788 = vweird.f32 %v781
          %vm789 = vmor %vm787, %vm788
          %v790 = vsel %vm789, %v781, %v786
          %v791 = vrsqrt.pop %v649
          %v792 = vmul.f32 %v791, %v649
          %v793 = vmul.f32 %v792, %v791
          %v794 = vmul.f32 0.5, %v793
          %v795 = vsub.f32 1.5, %v794
          %v796 = vmul.f32 %v791, %v795
          %vm797 = vweird.f32 %v649
          %vm798 = vweird.f32 %v791
          %vm799 = vmor %vm797, %vm798
          %v800 = vsel %vm799, %v791, %v796
          %v801 = vrsqrt.pop %v650
          %v802 = vmul.f32 %v801, %v650
          %v803 = vmul.f32 %v802, %v801
          %v804 = vmul.f32 0.5, %v803
          %v805 = vsub.f32 1.5, %v804
          %v806 = vmul.f32 %v801, %v805
          %vm807 = vweird.f32 %v650
          %vm808 = vweird.f32 %v801
          %vm809 = vmor %vm807, %vm808
          %v810 = vsel %vm809, %v801, %v806
          %v811 = vmul.f32 %v507, %v660
          %v812 = vmul.f32 %v508, %v660
          %v813 = vmul.f32 %v509, %v670
          %v814 = vmul.f32 %v510, %v670
          %v815 = vmul.f32 %v511, %v680
          %v816 = vmul.f32 %v512, %v680
          %v817 = vmul.f32 %v513, %v690
          %v818 = vmul.f32 %v514, %v690
          %v819 = vmul.f32 %v515, %v700
          %v820 = vmul.f32 %v516, %v700
          %v821 = vmul.f32 %v517, %v710
          %v822 = vmul.f32 %v518, %v710
          %v823 = vmul.f32 %v519, %v720
          %v824 = vmul.f32 %v520, %v720
          %v825 = vmul.f32 %v521, %v730
          %v826 = vmul.f32 %v522, %v730
          %v827 = vmul.f32 %v523, %v740
          %v828 = vmul.f32 %v524, %v740
          %v829 = vmul.f32 %v525, %v750
          %v830 = vmul.f32 %v526, %v750
          %v831 = vmul.f32 %v527, %v760
          %v832 = vmul.f32 %v528, %v760
          %v833 = vmul.f32 %v529, %v770
          %v834 = vmul.f32 %v530, %v770
          %v835 = vmul.f32 %v531, %v780
          %v836 = vmul.f32 %v532, %v780
          %v837 = vmul.f32 %v533, %v790
          %v838 = vmul.f32 %v534, %v790
          %v839 = vmul.f32 %v535, %v800
          %v840 = vmul.f32 %v536, %v800
          %v841 = vmul.f32 %v537, %v810
          %v842 = vmul.f32 %v538, %v810
          %v843 = vld [vmem:[#allocation7] sm:$0x3]
          %v845 = vperm.slane %v843, 0
          %v846 = vperm.slane %v843, 1
          %v849 = vmul.f32 %v811, %v845
          %v850 = vmul.f32 %v812, %v846
          %v851 = vmul.f32 %v813, %v845
          %v852 = vmul.f32 %v814, %v846
          %v853 = vmul.f32 %v815, %v845
          %v854 = vmul.f32 %v816, %v846
          %v855 = vmul.f32 %v817, %v845
          %v856 = vmul.f32 %v818, %v846
          %v857 = vmul.f32 %v819, %v845
          %v858 = vmul.f32 %v820, %v846
          %v859 = vmul.f32 %v821, %v845
          %v860 = vmul.f32 %v822, %v846
          %v861 = vmul.f32 %v823, %v845
          %v862 = vmul.f32 %v824, %v846
          %v863 = vmul.f32 %v825, %v845
          %v864 = vmul.f32 %v826, %v846
          %v865 = vmul.f32 %v827, %v845
          %v866 = vmul.f32 %v828, %v846
          %v867 = vmul.f32 %v829, %v845
          %v868 = vmul.f32 %v830, %v846
          %v869 = vmul.f32 %v831, %v845
          %v870 = vmul.f32 %v832, %v846
          %v871 = vmul.f32 %v833, %v845
          %v872 = vmul.f32 %v834, %v846
          %v873 = vmul.f32 %v835, %v845
          %v874 = vmul.f32 %v836, %v846
          %v875 = vmul.f32 %v837, %v845
          %v876 = vmul.f32 %v838, %v846
          %v877 = vmul.f32 %v839, %v845
          %v878 = vmul.f32 %v840, %v846
          %v879 = vmul.f32 %v841, %v845
          %v880 = vmul.f32 %v842, %v846
          %v881 = vld [vmem:[#allocation9] sm:$0x3]
          %v883 = vperm.slane %v881, 0
          %v884 = vperm.slane %v881, 1
          %v887 = vadd.f32 %v849, %v883
          %v888 = vadd.f32 %v850, %v884
          %v889 = vadd.f32 %v851, %v883
          %v890 = vadd.f32 %v852, %v884
          %v891 = vadd.f32 %v853, %v883
          %v892 = vadd.f32 %v854, %v884
          %v893 = vadd.f32 %v855, %v883
          %v894 = vadd.f32 %v856, %v884
          %v895 = vadd.f32 %v857, %v883
          %v896 = vadd.f32 %v858, %v884
          %v897 = vadd.f32 %v859, %v883
          %v898 = vadd.f32 %v860, %v884
          %v899 = vadd.f32 %v861, %v883
          %v900 = vadd.f32 %v862, %v884
          %v901 = vadd.f32 %v863, %v883
          %v902 = vadd.f32 %v864, %v884
          %v903 = vadd.f32 %v865, %v883
          %v904 = vadd.f32 %v866, %v884
          %v905 = vadd.f32 %v867, %v883
          %v906 = vadd.f32 %v868, %v884
          %v907 = vadd.f32 %v869, %v883
          %v908 = vadd.f32 %v870, %v884
          %v909 = vadd.f32 %v871, %v883
          %v910 = vadd.f32 %v872, %v884
          %v911 = vadd.f32 %v873, %v883
          %v912 = vadd.f32 %v874, %v884
          %v913 = vadd.f32 %v875, %v883
          %v914 = vadd.f32 %v876, %v884
          %v915 = vadd.f32 %v877, %v883
          %v916 = vadd.f32 %v878, %v884
          %v917 = vadd.f32 %v879, %v883
          %v918 = vadd.f32 %v880, %v884
          %v919 = vpack.c.bf16 %v888, %v887
          %v920 = vpack.c.bf16 %v890, %v889
          %v921 = vpack.c.bf16 %v892, %v891
          %v922 = vpack.c.bf16 %v894, %v893
          %v923 = vpack.c.bf16 %v896, %v895
          %v924 = vpack.c.bf16 %v898, %v897
          %v925 = vpack.c.bf16 %v900, %v899
          %v926 = vpack.c.bf16 %v902, %v901
          %v927 = vpack.c.bf16 %v904, %v903
          %v928 = vpack.c.bf16 %v906, %v905
          %v929 = vpack.c.bf16 %v908, %v907
          %v930 = vpack.c.bf16 %v910, %v909
          %v931 = vpack.c.bf16 %v912, %v911
          %v932 = vpack.c.bf16 %v914, %v913
          %v933 = vpack.c.bf16 %v916, %v915
          %v934 = vpack.c.bf16 %v918, %v917
          %935 = vst [vmem:[#allocation3] sm:$0xff] %v919
          %936 = vst [vmem:[#allocation3 + $0x8] sm:$0xff] %v920
          %937 = vst [vmem:[#allocation3 + $0x10] sm:$0xff] %v921
          %938 = vst [vmem:[#allocation3 + $0x18] sm:$0xff] %v922
          %939 = vst [vmem:[#allocation3 + $0x20] sm:$0xff] %v923
          %940 = vst [vmem:[#allocation3 + $0x28] sm:$0xff] %v924
          %941 = vst [vmem:[#allocation3 + $0x30] sm:$0xff] %v925
          %942 = vst [vmem:[#allocation3 + $0x38] sm:$0xff] %v926
          %943 = vst [vmem:[#allocation3 + $0x40] sm:$0xff] %v927
          %944 = vst [vmem:[#allocation3 + $0x48] sm:$0xff] %v928
          %945 = vst [vmem:[#allocation3 + $0x50] sm:$0xff] %v929
          %946 = vst [vmem:[#allocation3 + $0x58] sm:$0xff] %v930
          %947 = vst [vmem:[#allocation3 + $0x60] sm:$0xff] %v931
          %948 = vst [vmem:[#allocation3 + $0x68] sm:$0xff] %v932
          %949 = vst [vmem:[#allocation3 + $0x70] sm:$0xff] %v933
          %950 = vst [vmem:[#allocation3 + $0x78] sm:$0xff] %v934
        $region64: #{tpu_custom_call.1} parent=39 // pred_fallthru
          _
        %s951 = smul.u32 %s31, 256
        %v952 = vld [vmem:[#allocation2] sm:$0xff]
        %v953 = vld [vmem:[#allocation2 + $0x8] sm:$0xff]
        %v954 = vld [vmem:[#allocation2 + $0x10] sm:$0xff]
        %v955 = vld [vmem:[#allocation2 + $0x18] sm:$0xff]
        %v956 = vld [vmem:[#allocation2 + $0x20] sm:$0xff]
        %v957 = vld [vmem:[#allocation2 + $0x28] sm:$0xff]
        %v958 = vld [vmem:[#allocation2 + $0x30] sm:$0xff]
        %v959 = vld [vmem:[#allocation2 + $0x38] sm:$0xff]
        %v960 = vld [vmem:[#allocation2 + $0x40] sm:$0xff]
        %v961 = vld [vmem:[#allocation2 + $0x48] sm:$0xff]
        %v962 = vld [vmem:[#allocation2 + $0x50] sm:$0xff]
        %v963 = vld [vmem:[#allocation2 + $0x58] sm:$0xff]
        %v964 = vld [vmem:[#allocation2 + $0x60] sm:$0xff]
        %v965 = vld [vmem:[#allocation2 + $0x68] sm:$0xff]
        %v966 = vld [vmem:[#allocation2 + $0x70] sm:$0xff]
        %v967 = vld [vmem:[#allocation2 + $0x78] sm:$0xff]
        %v968 = vld [vmem:[#allocation2 + $0x80] sm:$0xff]
        %v969 = vld [vmem:[#allocation2 + $0x88] sm:$0xff]
        %v970 = vld [vmem:[#allocation2 + $0x90] sm:$0xff]
        %v971 = vld [vmem:[#allocation2 + $0x98] sm:$0xff]
        %v972 = vld [vmem:[#allocation2 + $0xa0] sm:$0xff]
        %v973 = vld [vmem:[#allocation2 + $0xa8] sm:$0xff]
        %v974 = vld [vmem:[#allocation2 + $0xb0] sm:$0xff]
        %v975 = vld [vmem:[#allocation2 + $0xb8] sm:$0xff]
        %v976 = vld [vmem:[#allocation2 + $0xc0] sm:$0xff]
        %v977 = vld [vmem:[#allocation2 + $0xc8] sm:$0xff]
        %v978 = vld [vmem:[#allocation2 + $0xd0] sm:$0xff]
        %v979 = vld [vmem:[#allocation2 + $0xd8] sm:$0xff]
        %v980 = vld [vmem:[#allocation2 + $0xe0] sm:$0xff]
        %v981 = vld [vmem:[#allocation2 + $0xe8] sm:$0xff]
        %v982 = vld [vmem:[#allocation2 + $0xf0] sm:$0xff]
        %v983 = vld [vmem:[#allocation2 + $0xf8] sm:$0xff]
        %s984 = sshra.s32 %s951, 7
        %s985 = sand.u32 %s951, 127
        %s986 = smul.addr %s984, 4
        %s987 = scalar_lea.vmem [#allocation3], %s986
        %v988 = vld [vmem:[%s987] sm:$0xff]
        %v989 = vld [vmem:[%s987 + $0x8] sm:$0xff]
        %v990 = vld [vmem:[%s987 + $0x10] sm:$0xff]
        %v991 = vld [vmem:[%s987 + $0x18] sm:$0xff]
        %v992 = vld [vmem:[%s987 + $0x20] sm:$0xff]
        %v993 = vld [vmem:[%s987 + $0x28] sm:$0xff]
        %v994 = vld [vmem:[%s987 + $0x30] sm:$0xff]
        %v995 = vld [vmem:[%s987 + $0x38] sm:$0xff]
        %v996 = vld [vmem:[%s987 + $0x40] sm:$0xff]
        %v997 = vld [vmem:[%s987 + $0x48] sm:$0xff]
        %v998 = vld [vmem:[%s987 + $0x50] sm:$0xff]
        %v999 = vld [vmem:[%s987 + $0x58] sm:$0xff]
        %v1000 = vld [vmem:[%s987 + $0x60] sm:$0xff]
        %v1001 = vld [vmem:[%s987 + $0x68] sm:$0xff]
        %v1002 = vld [vmem:[%s987 + $0x70] sm:$0xff]
        %v1003 = vld [vmem:[%s987 + $0x78] sm:$0xff]
        %v1004 = vld [vmem:[%s319] sm:$0xff]
        %v1005 = vld [vmem:[%s319 + $0x8] sm:$0xff]
        %v1006 = vld [vmem:[%s319 + $0x10] sm:$0xff]
        %v1007 = vld [vmem:[%s319 + $0x18] sm:$0xff]
        %v1008 = vld [vmem:[%s319 + $0x20] sm:$0xff]
        %v1009 = vld [vmem:[%s319 + $0x28] sm:$0xff]
        %v1010 = vld [vmem:[%s319 + $0x30] sm:$0xff]
        %v1011 = vld [vmem:[%s319 + $0x38] sm:$0xff]
        %v1012 = vld [vmem:[%s319 + $0x40] sm:$0xff]
        %v1013 = vld [vmem:[%s319 + $0x48] sm:$0xff]
        %v1014 = vld [vmem:[%s319 + $0x50] sm:$0xff]
        %v1015 = vld [vmem:[%s319 + $0x58] sm:$0xff]
        %v1016 = vld [vmem:[%s319 + $0x60] sm:$0xff]
        %v1017 = vld [vmem:[%s319 + $0x68] sm:$0xff]
        %v1018 = vld [vmem:[%s319 + $0x70] sm:$0xff]
        %v1019 = vld [vmem:[%s319 + $0x78] sm:$0xff]
        %v1020 = vld [vmem:[%s319 + $0x80] sm:$0xff]
        %v1021 = vld [vmem:[%s319 + $0x88] sm:$0xff]
        %v1022 = vld [vmem:[%s319 + $0x90] sm:$0xff]
        %v1023 = vld [vmem:[%s319 + $0x98] sm:$0xff]
        %v1024 = vld [vmem:[%s319 + $0xa0] sm:$0xff]
        %v1025 = vld [vmem:[%s319 + $0xa8] sm:$0xff]
        %v1026 = vld [vmem:[%s319 + $0xb0] sm:$0xff]
        %v1027 = vld [vmem:[%s319 + $0xb8] sm:$0xff]
        %v1028 = vld [vmem:[%s319 + $0xc0] sm:$0xff]
        %v1029 = vld [vmem:[%s319 + $0xc8] sm:$0xff]
        %v1030 = vld [vmem:[%s319 + $0xd0] sm:$0xff]
        %v1031 = vld [vmem:[%s319 + $0xd8] sm:$0xff]
        %v1032 = vld [vmem:[%s319 + $0xe0] sm:$0xff]
        %v1033 = vld [vmem:[%s319 + $0xe8] sm:$0xff]
        %v1034 = vld [vmem:[%s319 + $0xf0] sm:$0xff]
        %v1035 = vld [vmem:[%s319 + $0xf8] sm:$0xff]
        %v1052 = vunpack.c.l.b16 %v988
        %v1053 = vunpack.c.h.b16 %v988
        %v1054 = vunpack.c.l.b16 %v989
        %v1055 = vunpack.c.h.b16 %v989
        %v1056 = vunpack.c.l.b16 %v990
        %v1057 = vunpack.c.h.b16 %v990
        %v1058 = vunpack.c.l.b16 %v991
        %v1059 = vunpack.c.h.b16 %v991
        %v1060 = vunpack.c.l.b16 %v992
        %v1061 = vunpack.c.h.b16 %v992
        %v1062 = vunpack.c.l.b16 %v993
        %v1063 = vunpack.c.h.b16 %v993
        %v1064 = vunpack.c.l.b16 %v994
        %v1065 = vunpack.c.h.b16 %v994
        %v1066 = vunpack.c.l.b16 %v995
        %v1067 = vunpack.c.h.b16 %v995
        %v1068 = vunpack.c.l.b16 %v996
        %v1069 = vunpack.c.h.b16 %v996
        %v1070 = vunpack.c.l.b16 %v997
        %v1071 = vunpack.c.h.b16 %v997
        %v1072 = vunpack.c.l.b16 %v998
        %v1073 = vunpack.c.h.b16 %v998
        %v1074 = vunpack.c.l.b16 %v999
        %v1075 = vunpack.c.h.b16 %v999
        %v1076 = vunpack.c.l.b16 %v1000
        %v1077 = vunpack.c.h.b16 %v1000
        %v1078 = vunpack.c.l.b16 %v1001
        %v1079 = vunpack.c.h.b16 %v1001
        %v1080 = vunpack.c.l.b16 %v1002
        %v1081 = vunpack.c.h.b16 %v1002
        %v1082 = vunpack.c.l.b16 %v1003
        %v1083 = vunpack.c.h.b16 %v1003
        %v1084 = vpack.c.b16 %v1054, %v1052
        %v1085 = vpack.c.b16 %v1055, %v1053
        %v1086 = vpack.c.b16 %v1058, %v1056
        %v1087 = vpack.c.b16 %v1059, %v1057
        %v1088 = vpack.c.b16 %v1062, %v1060
        %v1089 = vpack.c.b16 %v1063, %v1061
        %v1090 = vpack.c.b16 %v1066, %v1064
        %v1091 = vpack.c.b16 %v1067, %v1065
        %v1092 = vpack.c.b16 %v1070, %v1068
        %v1093 = vpack.c.b16 %v1071, %v1069
        %v1094 = vpack.c.b16 %v1074, %v1072
        %v1095 = vpack.c.b16 %v1075, %v1073
        %v1096 = vpack.c.b16 %v1078, %v1076
        %v1097 = vpack.c.b16 %v1079, %v1077
        %v1098 = vpack.c.b16 %v1082, %v1080
        %v1099 = vpack.c.b16 %v1083, %v1081
        %v1148 = vunpack.c.l.b16 %v1004
        %v1149 = vunpack.c.h.b16 %v1004
        %v1150 = vunpack.c.l.b16 %v1005
        %v1151 = vunpack.c.h.b16 %v1005
        %v1152 = vunpack.c.l.b16 %v1006
        %v1153 = vunpack.c.h.b16 %v1006
        %v1154 = vunpack.c.l.b16 %v1007
        %v1155 = vunpack.c.h.b16 %v1007
        %v1156 = vunpack.c.l.b16 %v1008
        %v1157 = vunpack.c.h.b16 %v1008
        %v1158 = vunpack.c.l.b16 %v1009
        %v1159 = vunpack.c.h.b16 %v1009
        %v1160 = vunpack.c.l.b16 %v1010
        %v1161 = vunpack.c.h.b16 %v1010
        %v1162 = vunpack.c.l.b16 %v1011
        %v1163 = vunpack.c.h.b16 %v1011
        %v1164 = vunpack.c.l.b16 %v1012
        %v1165 = vunpack.c.h.b16 %v1012
        %v1166 = vunpack.c.l.b16 %v1013
        %v1167 = vunpack.c.h.b16 %v1013
        %v1168 = vunpack.c.l.b16 %v1014
        %v1169 = vunpack.c.h.b16 %v1014
        %v1170 = vunpack.c.l.b16 %v1015
        %v1171 = vunpack.c.h.b16 %v1015
        %v1172 = vunpack.c.l.b16 %v1016
        %v1173 = vunpack.c.h.b16 %v1016
        %v1174 = vunpack.c.l.b16 %v1017
        %v1175 = vunpack.c.h.b16 %v1017
        %v1176 = vunpack.c.l.b16 %v1018
        %v1177 = vunpack.c.h.b16 %v1018
        %v1178 = vunpack.c.l.b16 %v1019
        %v1179 = vunpack.c.h.b16 %v1019
        %v1180 = vunpack.c.l.b16 %v1020
        %v1181 = vunpack.c.h.b16 %v1020
        %v1182 = vunpack.c.l.b16 %v1021
        %v1183 = vunpack.c.h.b16 %v1021
        %v1184 = vunpack.c.l.b16 %v1022
        %v1185 = vunpack.c.h.b16 %v1022
        %v1186 = vunpack.c.l.b16 %v1023
        %v1187 = vunpack.c.h.b16 %v1023
        %v1188 = vunpack.c.l.b16 %v1024
        %v1189 = vunpack.c.h.b16 %v1024
        %v1190 = vunpack.c.l.b16 %v1025
        %v1191 = vunpack.c.h.b16 %v1025
        %v1192 = vunpack.c.l.b16 %v1026
        %v1193 = vunpack.c.h.b16 %v1026
        %v1194 = vunpack.c.l.b16 %v1027
        %v1195 = vunpack.c.h.b16 %v1027
        %v1196 = vunpack.c.l.b16 %v1028
        %v1197 = vunpack.c.h.b16 %v1028
        %v1198 = vunpack.c.l.b16 %v1029
        %v1199 = vunpack.c.h.b16 %v1029
        %v1200 = vunpack.c.l.b16 %v1030
        %v1201 = vunpack.c.h.b16 %v1030
        %v1202 = vunpack.c.l.b16 %v1031
        %v1203 = vunpack.c.h.b16 %v1031
        %v1204 = vunpack.c.l.b16 %v1032
        %v1205 = vunpack.c.h.b16 %v1032
        %v1206 = vunpack.c.l.b16 %v1033
        %v1207 = vunpack.c.h.b16 %v1033
        %v1208 = vunpack.c.l.b16 %v1034
        %v1209 = vunpack.c.h.b16 %v1034
        %v1210 = vunpack.c.l.b16 %v1035
        %v1211 = vunpack.c.h.b16 %v1035
        %v1212 = vpack.c.b16 %v1150, %v1148
        %v1213 = vpack.c.b16 %v1151, %v1149
        %v1214 = vpack.c.b16 %v1154, %v1152
        %v1215 = vpack.c.b16 %v1155, %v1153
        %v1216 = vpack.c.b16 %v1158, %v1156
        %v1217 = vpack.c.b16 %v1159, %v1157
        %v1218 = vpack.c.b16 %v1162, %v1160
        %v1219 = vpack.c.b16 %v1163, %v1161
        %v1220 = vpack.c.b16 %v1166, %v1164
        %v1221 = vpack.c.b16 %v1167, %v1165
        %v1222 = vpack.c.b16 %v1170, %v1168
        %v1223 = vpack.c.b16 %v1171, %v1169
        %v1224 = vpack.c.b16 %v1174, %v1172
        %v1225 = vpack.c.b16 %v1175, %v1173
        %v1226 = vpack.c.b16 %v1178, %v1176
        %v1227 = vpack.c.b16 %v1179, %v1177
        %v1228 = vpack.c.b16 %v1182, %v1180
        %v1229 = vpack.c.b16 %v1183, %v1181
        %v1230 = vpack.c.b16 %v1186, %v1184
        %v1231 = vpack.c.b16 %v1187, %v1185
        %v1232 = vpack.c.b16 %v1190, %v1188
        %v1233 = vpack.c.b16 %v1191, %v1189
        %v1234 = vpack.c.b16 %v1194, %v1192
        %v1235 = vpack.c.b16 %v1195, %v1193
        %v1236 = vpack.c.b16 %v1198, %v1196
        %v1237 = vpack.c.b16 %v1199, %v1197
        %v1238 = vpack.c.b16 %v1202, %v1200
        %v1239 = vpack.c.b16 %v1203, %v1201
        %v1240 = vpack.c.b16 %v1206, %v1204
        %v1241 = vpack.c.b16 %v1207, %v1205
        %v1242 = vpack.c.b16 %v1210, %v1208
        %v1243 = vpack.c.b16 %v1211, %v1209
        %1276 = vmatpush.bf16.msra.mxu0 %v1226
        %1277 = vmatpush.bf16.msra.mxu0 %v1224
        %1278 = vmatpush.bf16.msra.mxu0 %v1222
        %1279 = vmatpush.bf16.msra.mxu0 %v1220
        %1280 = vmatpush.bf16.msra.mxu0 %v1218
        %1281 = vmatpush.bf16.msra.mxu0 %v1216
        %1282 = vmatpush.bf16.msra.mxu0 %v1214
        %1283 = vmatpush.bf16.msra.mxu0 %v1212
        %1284 = vmatmul.bf16.gmra.mxu0 %v1084
        %v1285 = vpop.f32.mrf.mxu0
        %v1286 = vadd.f32 0.0, %v1285
        %v1287 = vpop.f32.mrf.mxu0
        %v1288 = vadd.f32 0.0, %v1287
        %1289 = vmatmul.bf16.gmra.mxu0 %v1086
        %v1290 = vpop.f32.mrf.mxu0
        %v1291 = vadd.f32 0.0, %v1290
        %v1292 = vpop.f32.mrf.mxu0
        %v1293 = vadd.f32 0.0, %v1292
        %1294 = vmatmul.bf16.gmra.mxu0 %v1088
        %v1295 = vpop.f32.mrf.mxu0
        %v1296 = vadd.f32 0.0, %v1295
        %v1297 = vpop.f32.mrf.mxu0
        %v1298 = vadd.f32 0.0, %v1297
        %1299 = vmatmul.bf16.gmra.mxu0 %v1090
        %v1300 = vpop.f32.mrf.mxu0
        %v1301 = vadd.f32 0.0, %v1300
        %v1302 = vpop.f32.mrf.mxu0
        %v1303 = vadd.f32 0.0, %v1302
        %1304 = vmatmul.bf16.gmra.mxu0 %v1092
        %v1305 = vpop.f32.mrf.mxu0
        %v1306 = vadd.f32 0.0, %v1305
        %v1307 = vpop.f32.mrf.mxu0
        %v1308 = vadd.f32 0.0, %v1307
        %1309 = vmatmul.bf16.gmra.mxu0 %v1094
        %v1310 = vpop.f32.mrf.mxu0
        %v1311 = vadd.f32 0.0, %v1310
        %v1312 = vpop.f32.mrf.mxu0
        %v1313 = vadd.f32 0.0, %v1312
        %1314 = vmatmul.bf16.gmra.mxu0 %v1096
        %v1315 = vpop.f32.mrf.mxu0
        %v1316 = vadd.f32 0.0, %v1315
        %v1317 = vpop.f32.mrf.mxu0
        %v1318 = vadd.f32 0.0, %v1317
        %1319 = vmatmul.bf16.gmra.mxu0 %v1098
        %v1320 = vpop.f32.mrf.mxu0
        %v1321 = vadd.f32 0.0, %v1320
        %v1322 = vpop.f32.mrf.mxu0
        %v1323 = vadd.f32 0.0, %v1322
        %1324 = vdwg.mxu0
        %1325 = vmatpush.bf16.msra.mxu0 %v1242
        %1326 = vmatpush.bf16.msra.mxu0 %v1240
        %1327 = vmatpush.bf16.msra.mxu0 %v1238
        %1328 = vmatpush.bf16.msra.mxu0 %v1236
        %1329 = vmatpush.bf16.msra.mxu0 %v1234
        %1330 = vmatpush.bf16.msra.mxu0 %v1232
        %1331 = vmatpush.bf16.msra.mxu0 %v1230
        %1332 = vmatpush.bf16.msra.mxu0 %v1228
        %1333 = vmatmul.bf16.gmra.mxu0 %v1085
        %v1334 = vpop.f32.mrf.mxu0
        %v1335 = vadd.f32 %v1286, %v1334
        %v1336 = vpop.f32.mrf.mxu0
        %v1337 = vadd.f32 %v1288, %v1336
        %1338 = vmatmul.bf16.gmra.mxu0 %v1087
        %v1339 = vpop.f32.mrf.mxu0
        %v1340 = vadd.f32 %v1291, %v1339
        %v1341 = vpop.f32.mrf.mxu0
        %v1342 = vadd.f32 %v1293, %v1341
        %1343 = vmatmul.bf16.gmra.mxu0 %v1089
        %v1344 = vpop.f32.mrf.mxu0
        %v1345 = vadd.f32 %v1296, %v1344
        %v1346 = vpop.f32.mrf.mxu0
        %v1347 = vadd.f32 %v1298, %v1346
        %1348 = vmatmul.bf16.gmra.mxu0 %v1091
        %v1349 = vpop.f32.mrf.mxu0
        %v1350 = vadd.f32 %v1301, %v1349
        %v1351 = vpop.f32.mrf.mxu0
        %v1352 = vadd.f32 %v1303, %v1351
        %1353 = vmatmul.bf16.gmra.mxu0 %v1093
        %v1354 = vpop.f32.mrf.mxu0
        %v1355 = vadd.f32 %v1306, %v1354
        %v1356 = vpop.f32.mrf.mxu0
        %v1357 = vadd.f32 %v1308, %v1356
        %1358 = vmatmul.bf16.gmra.mxu0 %v1095
        %v1359 = vpop.f32.mrf.mxu0
        %v1360 = vadd.f32 %v1311, %v1359
        %v1361 = vpop.f32.mrf.mxu0
        %v1362 = vadd.f32 %v1313, %v1361
        %1363 = vmatmul.bf16.gmra.mxu0 %v1097
        %v1364 = vpop.f32.mrf.mxu0
        %v1365 = vadd.f32 %v1316, %v1364
        %v1366 = vpop.f32.mrf.mxu0
        %v1367 = vadd.f32 %v1318, %v1366
        %1368 = vmatmul.bf16.gmra.mxu0 %v1099
        %v1369 = vpop.f32.mrf.mxu0
        %v1370 = vadd.f32 %v1321, %v1369
        %v1371 = vpop.f32.mrf.mxu0
        %v1372 = vadd.f32 %v1323, %v1371
        %1373 = vdwg.mxu0
        %1374 = vmatpush.bf16.msra.mxu0 %v1227
        %1375 = vmatpush.bf16.msra.mxu0 %v1225
        %1376 = vmatpush.bf16.msra.mxu0 %v1223
        %1377 = vmatpush.bf16.msra.mxu0 %v1221
        %1378 = vmatpush.bf16.msra.mxu0 %v1219
        %1379 = vmatpush.bf16.msra.mxu0 %v1217
        %1380 = vmatpush.bf16.msra.mxu0 %v1215
        %1381 = vmatpush.bf16.msra.mxu0 %v1213
        %1382 = vmatmul.bf16.gmra.mxu0 %v1084
        %v1383 = vpop.f32.mrf.mxu0
        %v1384 = vadd.f32 0.0, %v1383
        %v1385 = vpop.f32.mrf.mxu0
        %v1386 = vadd.f32 0.0, %v1385
        %1387 = vmatmul.bf16.gmra.mxu0 %v1086
        %v1388 = vpop.f32.mrf.mxu0
        %v1389 = vadd.f32 0.0, %v1388
        %v1390 = vpop.f32.mrf.mxu0
        %v1391 = vadd.f32 0.0, %v1390
        %1392 = vmatmul.bf16.gmra.mxu0 %v1088
        %v1393 = vpop.f32.mrf.mxu0
        %v1394 = vadd.f32 0.0, %v1393
        %v1395 = vpop.f32.mrf.mxu0
        %v1396 = vadd.f32 0.0, %v1395
        %1397 = vmatmul.bf16.gmra.mxu0 %v1090
        %v1398 = vpop.f32.mrf.mxu0
        %v1399 = vadd.f32 0.0, %v1398
        %v1400 = vpop.f32.mrf.mxu0
        %v1401 = vadd.f32 0.0, %v1400
        %1402 = vmatmul.bf16.gmra.mxu0 %v1092
        %v1403 = vpop.f32.mrf.mxu0
        %v1404 = vadd.f32 0.0, %v1403
        %v1405 = vpop.f32.mrf.mxu0
        %v1406 = vadd.f32 0.0, %v1405
        %1407 = vmatmul.bf16.gmra.mxu0 %v1094
        %v1408 = vpop.f32.mrf.mxu0
        %v1409 = vadd.f32 0.0, %v1408
        %v1410 = vpop.f32.mrf.mxu0
        %v1411 = vadd.f32 0.0, %v1410
        %1412 = vmatmul.bf16.gmra.mxu0 %v1096
        %v1413 = vpop.f32.mrf.mxu0
        %v1414 = vadd.f32 0.0, %v1413
        %v1415 = vpop.f32.mrf.mxu0
        %v1416 = vadd.f32 0.0, %v1415
        %1417 = vmatmul.bf16.gmra.mxu0 %v1098
        %v1418 = vpop.f32.mrf.mxu0
        %v1419 = vadd.f32 0.0, %v1418
        %v1420 = vpop.f32.mrf.mxu0
        %v1421 = vadd.f32 0.0, %v1420
        %1422 = vdwg.mxu0
        %1423 = vmatpush.bf16.msra.mxu0 %v1243
        %1424 = vmatpush.bf16.msra.mxu0 %v1241
        %1425 = vmatpush.bf16.msra.mxu0 %v1239
        %1426 = vmatpush.bf16.msra.mxu0 %v1237
        %1427 = vmatpush.bf16.msra.mxu0 %v1235
        %1428 = vmatpush.bf16.msra.mxu0 %v1233
        %1429 = vmatpush.bf16.msra.mxu0 %v1231
        %1430 = vmatpush.bf16.msra.mxu0 %v1229
        %1431 = vmatmul.bf16.gmra.mxu0 %v1085
        %v1432 = vpop.f32.mrf.mxu0
        %v1433 = vadd.f32 %v1384, %v1432
        %v1434 = vpop.f32.mrf.mxu0
        %v1435 = vadd.f32 %v1386, %v1434
        %1436 = vmatmul.bf16.gmra.mxu0 %v1087
        %v1437 = vpop.f32.mrf.mxu0
        %v1438 = vadd.f32 %v1389, %v1437
        %v1439 = vpop.f32.mrf.mxu0
        %v1440 = vadd.f32 %v1391, %v1439
        %1441 = vmatmul.bf16.gmra.mxu0 %v1089
        %v1442 = vpop.f32.mrf.mxu0
        %v1443 = vadd.f32 %v1394, %v1442
        %v1444 = vpop.f32.mrf.mxu0
        %v1445 = vadd.f32 %v1396, %v1444
        %1446 = vmatmul.bf16.gmra.mxu0 %v1091
        %v1447 = vpop.f32.mrf.mxu0
        %v1448 = vadd.f32 %v1399, %v1447
        %v1449 = vpop.f32.mrf.mxu0
        %v1450 = vadd.f32 %v1401, %v1449
        %1451 = vmatmul.bf16.gmra.mxu0 %v1093
        %v1452 = vpop.f32.mrf.mxu0
        %v1453 = vadd.f32 %v1404, %v1452
        %v1454 = vpop.f32.mrf.mxu0
        %v1455 = vadd.f32 %v1406, %v1454
        %1456 = vmatmul.bf16.gmra.mxu0 %v1095
        %v1457 = vpop.f32.mrf.mxu0
        %v1458 = vadd.f32 %v1409, %v1457
        %v1459 = vpop.f32.mrf.mxu0
        %v1460 = vadd.f32 %v1411, %v1459
        %1461 = vmatmul.bf16.gmra.mxu0 %v1097
        %v1462 = vpop.f32.mrf.mxu0
        %v1463 = vadd.f32 %v1414, %v1462
        %v1464 = vpop.f32.mrf.mxu0
        %v1465 = vadd.f32 %v1416, %v1464
        %1466 = vmatmul.bf16.gmra.mxu0 %v1099
        %v1467 = vpop.f32.mrf.mxu0
        %v1468 = vadd.f32 %v1419, %v1467
        %v1469 = vpop.f32.mrf.mxu0
        %v1470 = vadd.f32 %v1421, %v1469
        %1471 = vdwg.mxu0
        %v1472 = vadd.f32 %v952, %v1335
        %v1473 = vadd.f32 %v953, %v1433
        %v1474 = vadd.f32 %v954, %v1337
        %v1475 = vadd.f32 %v955, %v1435
        %v1476 = vadd.f32 %v956, %v1340
        %v1477 = vadd.f32 %v957, %v1438
        %v1478 = vadd.f32 %v958, %v1342
        %v1479 = vadd.f32 %v959, %v1440
        %v1480 = vadd.f32 %v960, %v1345
        %v1481 = vadd.f32 %v961, %v1443
        %v1482 = vadd.f32 %v962, %v1347
        %v1483 = vadd.f32 %v963, %v1445
        %v1484 = vadd.f32 %v964, %v1350
        %v1485 = vadd.f32 %v965, %v1448
        %v1486 = vadd.f32 %v966, %v1352
        %v1487 = vadd.f32 %v967, %v1450
        %v1488 = vadd.f32 %v968, %v1355
        %v1489 = vadd.f32 %v969, %v1453
        %v1490 = vadd.f32 %v970, %v1357
        %v1491 = vadd.f32 %v971, %v1455
        %v1492 = vadd.f32 %v972, %v1360
        %v1493 = vadd.f32 %v973, %v1458
        %v1494 = vadd.f32 %v974, %v1362
        %v1495 = vadd.f32 %v975, %v1460
        %v1496 = vadd.f32 %v976, %v1365
        %v1497 = vadd.f32 %v977, %v1463
        %v1498 = vadd.f32 %v978, %v1367
        %v1499 = vadd.f32 %v979, %v1465
        %v1500 = vadd.f32 %v980, %v1370
        %v1501 = vadd.f32 %v981, %v1468
        %v1502 = vadd.f32 %v982, %v1372
        %v1503 = vadd.f32 %v983, %v1470
        %1504 = vst [vmem:[#allocation2] sm:$0xff] %v1472
        %1505 = vst [vmem:[#allocation2 + $0x8] sm:$0xff] %v1473
        %1506 = vst [vmem:[#allocation2 + $0x10] sm:$0xff] %v1474
        %1507 = vst [vmem:[#allocation2 + $0x18] sm:$0xff] %v1475
        %1508 = vst [vmem:[#allocation2 + $0x20] sm:$0xff] %v1476
        %1509 = vst [vmem:[#allocation2 + $0x28] sm:$0xff] %v1477
        %1510 = vst [vmem:[#allocation2 + $0x30] sm:$0xff] %v1478
        %1511 = vst [vmem:[#allocation2 + $0x38] sm:$0xff] %v1479
        %1512 = vst [vmem:[#allocation2 + $0x40] sm:$0xff] %v1480
        %1513 = vst [vmem:[#allocation2 + $0x48] sm:$0xff] %v1481
        %1514 = vst [vmem:[#allocation2 + $0x50] sm:$0xff] %v1482
        %1515 = vst [vmem:[#allocation2 + $0x58] sm:$0xff] %v1483
        %1516 = vst [vmem:[#allocation2 + $0x60] sm:$0xff] %v1484
        %1517 = vst [vmem:[#allocation2 + $0x68] sm:$0xff] %v1485
        %1518 = vst [vmem:[#allocation2 + $0x70] sm:$0xff] %v1486
        %1519 = vst [vmem:[#allocation2 + $0x78] sm:$0xff] %v1487
        %1520 = vst [vmem:[#allocation2 + $0x80] sm:$0xff] %v1488
        %1521 = vst [vmem:[#allocation2 + $0x88] sm:$0xff] %v1489
        %1522 = vst [vmem:[#allocation2 + $0x90] sm:$0xff] %v1490
        %1523 = vst [vmem:[#allocation2 + $0x98] sm:$0xff] %v1491
        %1524 = vst [vmem:[#allocation2 + $0xa0] sm:$0xff] %v1492
        %1525 = vst [vmem:[#allocation2 + $0xa8] sm:$0xff] %v1493
        %1526 = vst [vmem:[#allocation2 + $0xb0] sm:$0xff] %v1494
        %1527 = vst [vmem:[#allocation2 + $0xb8] sm:$0xff] %v1495
        %1528 = vst [vmem:[#allocation2 + $0xc0] sm:$0xff] %v1496
        %1529 = vst [vmem:[#allocation2 + $0xc8] sm:$0xff] %v1497
        %1530 = vst [vmem:[#allocation2 + $0xd0] sm:$0xff] %v1498
        %1531 = vst [vmem:[#allocation2 + $0xd8] sm:$0xff] %v1499
        %1532 = vst [vmem:[#allocation2 + $0xe0] sm:$0xff] %v1500
        %1533 = vst [vmem:[#allocation2 + $0xe8] sm:$0xff] %v1501
        %1534 = vst [vmem:[#allocation2 + $0xf0] sm:$0xff] %v1502
        %1535 = vst [vmem:[#allocation2 + $0xf8] sm:$0xff] %v1503
        // Predicated region
        $region65: #{tpu_custom_call.1} parent=39 // pred_check
          %p1536 = pneg %p368
        $region66: #{tpu_custom_call.1} parent=39 // pred_check_branch
          %1538 = sbr.rel (%p1536) target = $region68
        $region67: #{tpu_custom_call.1} parent=39 // pred_region
          %v1539 = vld [vmem:[#allocation2] sm:$0xff]
          %v1540 = vld [vmem:[#allocation2 + $0x8] sm:$0xff]
          %v1541 = vld [vmem:[#allocation2 + $0x10] sm:$0xff]
          %v1542 = vld [vmem:[#allocation2 + $0x18] sm:$0xff]
          %v1543 = vld [vmem:[#allocation2 + $0x20] sm:$0xff]
          %v1544 = vld [vmem:[#allocation2 + $0x28] sm:$0xff]
          %v1545 = vld [vmem:[#allocation2 + $0x30] sm:$0xff]
          %v1546 = vld [vmem:[#allocation2 + $0x38] sm:$0xff]
          %v1547 = vld [vmem:[#allocation2 + $0x40] sm:$0xff]
          %v1548 = vld [vmem:[#allocation2 + $0x48] sm:$0xff]
          %v1549 = vld [vmem:[#allocation2 + $0x50] sm:$0xff]
          %v1550 = vld [vmem:[#allocation2 + $0x58] sm:$0xff]
          %v1551 = vld [vmem:[#allocation2 + $0x60] sm:$0xff]
          %v1552 = vld [vmem:[#allocation2 + $0x68] sm:$0xff]
          %v1553 = vld [vmem:[#allocation2 + $0x70] sm:$0xff]
          %v1554 = vld [vmem:[#allocation2 + $0x78] sm:$0xff]
          %v1555 = vld [vmem:[#allocation2 + $0x80] sm:$0xff]
          %v1556 = vld [vmem:[#allocation2 + $0x88] sm:$0xff]
          %v1557 = vld [vmem:[#allocation2 + $0x90] sm:$0xff]
          %v1558 = vld [vmem:[#allocation2 + $0x98] sm:$0xff]
          %v1559 = vld [vmem:[#allocation2 + $0xa0] sm:$0xff]
          %v1560 = vld [vmem:[#allocation2 + $0xa8] sm:$0xff]
          %v1561 = vld [vmem:[#allocation2 + $0xb0] sm:$0xff]
          %v1562 = vld [vmem:[#allocation2 + $0xb8] sm:$0xff]
          %v1563 = vld [vmem:[#allocation2 + $0xc0] sm:$0xff]
          %v1564 = vld [vmem:[#allocation2 + $0xc8] sm:$0xff]
          %v1565 = vld [vmem:[#allocation2 + $0xd0] sm:$0xff]
          %v1566 = vld [vmem:[#allocation2 + $0xd8] sm:$0xff]
          %v1567 = vld [vmem:[#allocation2 + $0xe0] sm:$0xff]
          %v1568 = vld [vmem:[#allocation2 + $0xe8] sm:$0xff]
          %v1569 = vld [vmem:[#allocation2 + $0xf0] sm:$0xff]
          %v1570 = vld [vmem:[#allocation2 + $0xf8] sm:$0xff]
          %v1571 = vld [vmem:[%s329] sm:$0x3]
          %v1573 = vperm.slane %v1571, 0
          %v1574 = vperm.slane %v1571, 1
          %v1577 = vadd.f32 %v1539, %v1573
          %v1578 = vadd.f32 %v1540, %v1574
          %v1579 = vadd.f32 %v1541, %v1573
          %v1580 = vadd.f32 %v1542, %v1574
          %v1581 = vadd.f32 %v1543, %v1573
          %v1582 = vadd.f32 %v1544, %v1574
          %v1583 = vadd.f32 %v1545, %v1573
          %v1584 = vadd.f32 %v1546, %v1574
          %v1585 = vadd.f32 %v1547, %v1573
          %v1586 = vadd.f32 %v1548, %v1574
          %v1587 = vadd.f32 %v1549, %v1573
          %v1588 = vadd.f32 %v1550, %v1574
          %v1589 = vadd.f32 %v1551, %v1573
          %v1590 = vadd.f32 %v1552, %v1574
          %v1591 = vadd.f32 %v1553, %v1573
          %v1592 = vadd.f32 %v1554, %v1574
          %v1593 = vadd.f32 %v1555, %v1573
          %v1594 = vadd.f32 %v1556, %v1574
          %v1595 = vadd.f32 %v1557, %v1573
          %v1596 = vadd.f32 %v1558, %v1574
          %v1597 = vadd.f32 %v1559, %v1573
          %v1598 = vadd.f32 %v1560, %v1574
          %v1599 = vadd.f32 %v1561, %v1573
          %v1600 = vadd.f32 %v1562, %v1574
          %v1601 = vadd.f32 %v1563, %v1573
          %v1602 = vadd.f32 %v1564, %v1574
          %v1603 = vadd.f32 %v1565, %v1573
          %v1604 = vadd.f32 %v1566, %v1574
          %v1605 = vadd.f32 %v1567, %v1573
          %v1606 = vadd.f32 %v1568, %v1574
          %v1607 = vadd.f32 %v1569, %v1573
          %v1608 = vadd.f32 %v1570, %v1574
          %v1609 = vpack.c.bf16 %v1578, %v1577
          %v1610 = vpack.c.bf16 %v1580, %v1579
          %v1611 = vpack.c.bf16 %v1582, %v1581
          %v1612 = vpack.c.bf16 %v1584, %v1583
          %v1613 = vpack.c.bf16 %v1586, %v1585
          %v1614 = vpack.c.bf16 %v1588, %v1587
          %v1615 = vpack.c.bf16 %v1590, %v1589
          %v1616 = vpack.c.bf16 %v1592, %v1591
          %v1617 = vpack.c.bf16 %v1594, %v1593
          %v1618 = vpack.c.bf16 %v1596, %v1595
          %v1619 = vpack.c.bf16 %v1598, %v1597
          %v1620 = vpack.c.bf16 %v1600, %v1599
          %v1621 = vpack.c.bf16 %v1602, %v1601
          %v1622 = vpack.c.bf16 %v1604, %v1603
          %v1623 = vpack.c.bf16 %v1606, %v1605
          %v1624 = vpack.c.bf16 %v1608, %v1607
          %1625 = vst [vmem:[%s361] sm:$0xff] %v1609
          %1626 = vst [vmem:[%s361 + $0x8] sm:$0xff] %v1610
          %1627 = vst [vmem:[%s361 + $0x10] sm:$0xff] %v1611
          %1628 = vst [vmem:[%s361 + $0x18] sm:$0xff] %v1612
          %1629 = vst [vmem:[%s361 + $0x20] sm:$0xff] %v1613
          %1630 = vst [vmem:[%s361 + $0x28] sm:$0xff] %v1614
          %1631 = vst [vmem:[%s361 + $0x30] sm:$0xff] %v1615
          %1632 = vst [vmem:[%s361 + $0x38] sm:$0xff] %v1616
          %1633 = vst [vmem:[%s361 + $0x40] sm:$0xff] %v1617
          %1634 = vst [vmem:[%s361 + $0x48] sm:$0xff] %v1618
          %1635 = vst [vmem:[%s361 + $0x50] sm:$0xff] %v1619
          %1636 = vst [vmem:[%s361 + $0x58] sm:$0xff] %v1620
          %1637 = vst [vmem:[%s361 + $0x60] sm:$0xff] %v1621
          %1638 = vst [vmem:[%s361 + $0x68] sm:$0xff] %v1622
          %1639 = vst [vmem:[%s361 + $0x70] sm:$0xff] %v1623
          %1640 = vst [vmem:[%s361 + $0x78] sm:$0xff] %v1624
        $region68: #{tpu_custom_call.1} parent=39 // pred_fallthru
          _
        %s1641 = sand.u32 %s175, 1
        %s1642 = scalar_lea.sflag [#allocation6], %s1641
        %s1643 = sand.u32 %s175, 1
        %s1644 = smul.addr %s1643, 128
        %s1645 = scalar_lea.vmem [#allocation13], %s1644
        // Predicated region
        $region69: #{tpu_custom_call.1} parent=39 // pred_check
          %p1646 = pneg %p185
        $region70: #{tpu_custom_call.1} parent=39 // pred_check_branch
          %1648 = sbr.rel (%p1646) target = $region72
        $region71: #{tpu_custom_call.1} parent=39 // pred_region
          %s1649 = smul.u32 16, %s29
          %s1650 = smul.u32 2, %s30
          %1652 = vsyncadd %s1642, 0
          %s1653 = smul.addr %s1649, 6
          %s1654 = sadd.s32 %s1650, %s1653
          %s1655 = smul.addr %s1654, 4
          %s1656 = scalar_lea.hbm %s5, %s1655
          %s1657 = sshll.u32 %s1645, 4
          %s1658 = int_to_ptr.vmem [resolvable:$true] %s1657
          %s1659 = sshll.u32 %s1656, 4
          %s1660 = int_to_ptr.hbm [resolvable:$true] %s1659
          %1665 = dma.vmem_to_hbm [thread:$0]  %s1658, 2048, %s1660, %s1642, 128, 384, 8
        $region72: #{tpu_custom_call.1} parent=39 // pred_fallthru
          _
      $region40: #{tpu_custom_call.1} parent=5 // pred_fallthru
        _
      %p1666 = scmp.le.s32.totalorder 2, %s19
      // Predicated region
      $region73: #{tpu_custom_call.1} parent=5 // pred_check
        %p1667 = pneg %p1666
      $region74: #{tpu_custom_call.1} parent=5 // pred_check_branch
        %1669 = sbr.rel (%p1667) target = $region76
      $region75: #{tpu_custom_call.1} parent=5 // pred_region
        %s1670 = ssub.s32 %s19, 2
        // Predicated region
        $region77: #{tpu_custom_call.1} parent=75 // pred_check
          %p1671 = pneg %p191
        $region78: #{tpu_custom_call.1} parent=75 // pred_check_branch
          %1673 = sbr.rel (%p1671) target = $region80
        $region79: #{tpu_custom_call.1} parent=75 // pred_region
          %s1674 = sand.u32 %s176, 1
          %s1675 = scalar_lea.sflag [#allocation6], %s1674
          %s1676 = sand.u32 %s176, 1
          %s1677 = smul.addr %s1676, 128
          %s1678 = scalar_lea.vmem [#allocation13], %s1677
          %1680 = dma.done %s1675, 2048
        $region80: #{tpu_custom_call.1} parent=75 // pred_fallthru
          _
      $region76: #{tpu_custom_call.1} parent=5 // pred_fallthru
        _
    $region6: #{tpu_custom_call.1} parent=1 // loop_footer
      %s23 = sadd.s32 1, %s19
    $region7: #{tpu_custom_call.1} parent=1 // loop_footer_branch
      %18 = sbr.rel target = $region3
    $region8: #{tpu_custom_call.1} parent=1 // loop_exit
      _
    %1681 = vsyncpa [#allocation5], 1
    %s1682 = scalar_lea.sflag [#allocation5], 1
    %1683 = vsyncpa %s1682, 1
    %1684 = vsyncpa [#allocation8], 1
    %1685 = vsyncpa [#allocation11], 1
    %s1686 = scalar_lea.sflag [#allocation11], 1
    %1687 = vsyncpa %s1686, 1
    %1688 = vsyncpa [#allocation6], 1
    %s1689 = scalar_lea.sflag [#allocation6], 1
    %1690 = vsyncpa %s1689, 1

</llo_original>
